<compile_context>
chip_gen: v5e
topology: v5e:2x2
jax: 0.10.0
libtpu: 0.0.40
codegen_flags: <defaults>
</compile_context>

<pallas_src>
import functools

import jax
import jax.numpy as jnp
from jax.experimental import pallas as pl
from jax.experimental.pallas import tpu as pltpu


# ----------------------------------------------------------------------------
# Pallas kernel: whole forward pass (2-layer GRU over time + final Linear).
# ----------------------------------------------------------------------------
def _gru_fc_kernel(x_ref, w_ref, m_ref, out_ref, *,
                   T: int, B: int, F: int, H: int, O: int,
                   apply_softmax: bool):
    H2, H3, H4, H6, H7, H8 = 2 * H, 3 * H, 4 * H, 6 * H, 7 * H, 8 * H
    CW = w_ref.shape[1]

    wbig = w_ref[...]                       # (F+2H, CW) bf16 fused weight
    misc = m_ref[...]                       # (16+H, CW) f32
    b_big = misc[0:1, :]                    # fused per-step bias row
    b_fc = misc[8:9, :]                     # fc bias row
    w_fc = misc[16:16 + H, :]               # (H, CW) fc weight (zero-padded)

    xall = x_ref[...]                       # (B, T*F) f32; cols [t*F:(t+1)*F] = x_t

    # hoisted loop-invariant broadcast (JAX does not CSE broadcast_in_dim)
    b_big_b = jnp.broadcast_to(b_big, (B, CW))

    def sigm(v):                            # exact sigmoid via a single EUP tanh
        return 0.5 * jnp.tanh(0.5 * v) + 0.5

    # ---- prime matmul: layer-0 pre-activations for t = 0 (h_{-1} = 0) -------
    x0 = xall[:, 0:F]
    lhs0 = jnp.concatenate([x0, jnp.zeros((B, H2), jnp.float32)], axis=1)
    g = jnp.dot(lhs0.astype(jnp.bfloat16), wbig,
                preferred_element_type=jnp.float32) + b_big_b
    p0 = g[:, H4:H8]                        # [rz0_pre | gi0_n | gh0_n] for t=0

    h0 = jnp.zeros((B, H), jnp.float32)
    h1 = jnp.zeros((B, H), jnp.float32)

    # ---- fully-unrolled recurrence (T static & small) ------------------------
    for t in range(T):
        # ----- layer 0, step t (pre-activations came out of previous matmul) --
        rz0 = sigm(p0[:, 0:H2])
        r0 = rz0[:, 0:H]
        z0 = rz0[:, H:H2]
        n0 = jnp.tanh(p0[:, H2:H3] + r0 * p0[:, H3:H4])
        if t == 0:
            h0 = (1.0 - z0) * n0            # h0_{-1} == 0
        else:
            h0 = (1.0 - z0) * n0 + z0 * h0

        # ----- single fused MXU push for this step -----------------------------
        #   cols [0:4H]  -> layer-1 pre-activations for step t
        #   cols [4H:8H] -> layer-0 pre-activations for step t+1
        nxt = t + 1 if t + 1 < T else T - 1          # last step: cols 4H:8H unused
        x_n = xall[:, nxt * F:(nxt + 1) * F]
        lhs = jnp.concatenate([x_n, h0, h1], axis=1).astype(jnp.bfloat16)
        g = jnp.dot(lhs, wbig, preferred_element_type=jnp.float32) + b_big_b

        # ----- layer 1, step t -------------------------------------------------
        rz1 = sigm(g[:, 0:H2])
        r1 = rz1[:, 0:H]
        z1 = rz1[:, H:H2]
        n1 = jnp.tanh(g[:, H2:H3] + r1 * g[:, H3:H4])
        if t == 0:
            h1 = (1.0 - z1) * n1            # h1_{-1} == 0
        else:
            h1 = (1.0 - z1) * n1 + z1 * h1

        p0 = g[:, H4:H8]

    # ---- fc(output[:, -1, :]) -> lane-dense (B, CW) store --------------------
    logits = jnp.dot(h1, w_fc, preferred_element_type=jnp.float32) + b_fc
    if apply_softmax:
        lane = jax.lax.broadcasted_iota(jnp.int32, (B, CW), 1)
        logits = jnp.where(lane < O, logits, -1e30)   # mask pad lanes pre-softmax
        m = jnp.max(logits, axis=-1, keepdims=True)
        e = jnp.exp(logits - m)
        s = jnp.sum(e, axis=-1, keepdims=True)
        logits = e * pl.reciprocal(s, approx=True)
    out_ref[...] = logits


# ----------------------------------------------------------------------------
# Parameter init (PyTorch-style) and packing into 2 slabs.
# ----------------------------------------------------------------------------
def init_params(key, feature_size, hidden, output_size, num_layers=2):
    """PyTorch-style uniform(-1/sqrt(H), 1/sqrt(H)) init, deterministic.
    Weights stored pre-transposed: (in_dim, 3H) / (H, O); biases (1, 3H)."""
    s = 1.0 / (hidden ** 0.5)
    params = {}
    keys = jax.random.split(key, 4 * num_layers + 2)
    ki = 0
    for layer in range(num_layers):
        in_dim = feature_size if layer == 0 else hidden
        params[f"wih{layer}"] = jax.random.uniform(
            keys[ki], (in_dim, 3 * hidden), jnp.float32, -s, s); ki += 1
        params[f"whh{layer}"] = jax.random.uniform(
            keys[ki], (hidden, 3 * hidden), jnp.float32, -s, s); ki += 1
        params[f"bih{layer}"] = jax.random.uniform(
            keys[ki], (1, 3 * hidden), jnp.float32, -s, s); ki += 1
        params[f"bhh{layer}"] = jax.random.uniform(
            keys[ki], (1, 3 * hidden), jnp.float32, -s, s); ki += 1
    params["wfc"] = jax.random.uniform(
        keys[ki], (hidden, output_size), jnp.float32, -s, s); ki += 1
    params["bfc"] = jax.random.uniform(
        keys[ki], (1, output_size), jnp.float32, -s, s); ki += 1
    return params


def pack_params(params, feature_size, hidden, output_size):
    """Pack the 11 parameter arrays (once, outside the hot path) into:
      * wbig (F+2H, CW) bf16 : fused per-step weight whose columns are
        [rz1_pre | gi1_n | gh1_n | rz0_pre_next | gi0_n_next | gh0_n_next]
      * misc (16+H, CW) f32  : row 0 fused bias, row 8 fc bias, rows 16:16+H fc weight
    """
    F, H, O = feature_size, hidden, output_size
    H2, H3, H4, H6, H7, H8 = 2 * H, 3 * H, 4 * H, 6 * H, 7 * H, 8 * H
    CW = ((max(H8, O) + 127) // 128) * 128

    wih0, whh0 = params["wih0"], params["whh0"]
    wih1, whh1 = params["wih1"], params["whh1"]
    bih0, bhh0 = params["bih0"][0], params["bhh0"][0]
    bih1, bhh1 = params["bih1"][0], params["bhh1"][0]
    wfc, bfc = params["wfc"], params["bfc"][0]

    R = F + 2 * H
    wbig = jnp.zeros((R, CW), jnp.float32)
    # x rows: feed layer-0 pre-activations for the NEXT step
    wbig = wbig.at[0:F, H4:H6].set(wih0[:, 0:H2])
    wbig = wbig.at[0:F, H6:H7].set(wih0[:, H2:H3])
    # h0 rows: feed layer-1 (current step) and layer-0 hidden proj (next step)
    wbig = wbig.at[F:F + H, 0:H2].set(wih1[:, 0:H2])
    wbig = wbig.at[F:F + H, H2:H3].set(wih1[:, H2:H3])
    wbig = wbig.at[F:F + H, H4:H6].set(whh0[:, 0:H2])
    wbig = wbig.at[F:F + H, H7:H8].set(whh0[:, H2:H3])
    # h1 rows: feed layer-1 hidden projection (current step)
    wbig = wbig.at[F + H:F + 2 * H, 0:H2].set(whh1[:, 0:H2])
    wbig = wbig.at[F + H:F + 2 * H, H3:H4].set(whh1[:, H2:H3])
    wbig = wbig.astype(jnp.bfloat16)

    bbig = jnp.zeros((CW,), jnp.float32)
    bbig = bbig.at[0:H2].set(bih1[0:H2] + bhh1[0:H2])       # layer-1 rz
    bbig = bbig.at[H2:H3].set(bih1[H2:H3])                  # layer-1 gi_n
    bbig = bbig.at[H3:H4].set(bhh1[H2:H3])                  # layer-1 gh_n
    bbig = bbig.at[H4:H6].set(bih0[0:H2] + bhh0[0:H2])      # layer-0 rz (next)
    bbig = bbig.at[H6:H7].set(bih0[H2:H3])                  # layer-0 gi_n (next)
    bbig = bbig.at[H7:H8].set(bhh0[H2:H3])                  # layer-0 gh_n (next)

    misc = jnp.zeros((16 + H, CW), jnp.float32)              # 8-aligned rows
    misc = misc.at[0, :].set(bbig)
    misc = misc.at[8, :O].set(bfc)
    misc = misc.at[16:16 + H, :O].set(wfc)

    return {"wbig": wbig, "misc": misc, "F": F, "H": H, "O": O}


# ----------------------------------------------------------------------------
# Wrapper: pallas_call plumbing.
# ----------------------------------------------------------------------------
def rainbow4trade_forward(obs, packed, *, softmax=False):
    """obs: (B, T, F) float32 (PyTorch batch_first convention)."""
    obs = jnp.asarray(obs, jnp.float32)
    B0, T, F = obs.shape
    H, O = packed["H"], packed["O"]
    assert packed["F"] == F

    # Keep the per-step row slices 8-sublane aligned (no-op for B0 % 8 == 0).
    B = ((B0 + 7) // 8) * 8
    if B != B0:
        obs = jnp.pad(obs, ((0, B - B0), (0, 0), (0, 0)))

    # Free row-major reshape (no transpose / relayout): row b = [x_0 .. x_{T-1}].
    x2 = obs.reshape(B, T * F)

    CW = packed["wbig"].shape[1]
    vmem = pl.BlockSpec(memory_space=pltpu.MemorySpace.VMEM)
    kernel = functools.partial(_gru_fc_kernel, T=T, B=B, F=F, H=H, O=O,
                               apply_softmax=softmax)

    out = pl.pallas_call(
        kernel,
        out_shape=jax.ShapeDtypeStruct((B, CW), jnp.float32),
        in_specs=[vmem, vmem, vmem],
        out_specs=vmem,
    )(x2, packed["wbig"], packed["misc"])
    return out[:B0, :O]
    # TODO(synk): the torch forward also returns `state` untouched; that pass-
    # through has no tensor computation so it is not represented in the kernel.


# ----------------------------------------------------------------------------
# Pure-JAX reference (mirrors torch.nn.GRU + Linear) for a sanity check.
# ----------------------------------------------------------------------------
def reference_forward(obs, params, *, softmax=False):
    obs = obs.astype(jnp.float32)
    B, T, F = obs.shape
    H = params["whh0"].shape[0]

    def cell(x_t, h, wih, whh, bih, bhh):
        gi = x_t @ wih + bih
        gh = h @ whh + bhh
        r = jax.nn.sigmoid(gi[:, :H] + gh[:, :H])
        z = jax.nn.sigmoid(gi[:, H:2 * H] + gh[:, H:2 * H])
        n = jnp.tanh(gi[:, 2 * H:] + r * gh[:, 2 * H:])
        return (1.0 - z) * n + z * h

    h0 = jnp.zeros((B, H), jnp.float32)
    h1 = jnp.zeros((B, H), jnp.float32)
    for t in range(T):
        x_t = obs[:, t, :]
        h0 = cell(x_t, h0, params["wih0"], params["whh0"],
                  params["bih0"], params["bhh0"])
        h1 = cell(h0, h1, params["wih1"], params["whh1"],
                  params["bih1"], params["bhh1"])
    out = h1 @ params["wfc"] + params["bfc"]
    if softmax:
        out = jax.nn.softmax(out, axis=-1)
    return out


if __name__ == "__main__":
    # Small shapes: batch=8, seq=8, feature_size=16, timestep(=hidden)=32, output=8
    B, T, F = 8, 8, 16
    HIDDEN = 32          # "timestep" ctor arg == GRU hidden size in this module
    OUT = 8
    SOFTMAX = True

    key = jax.random.PRNGKey(0)
    k_obs, k_par = jax.random.split(key)
    obs = jax.random.normal(k_obs, (B, T, F), jnp.float32)
    params = init_params(k_par, F, HIDDEN, OUT)
    packed = pack_params(params, F, HIDDEN, OUT)

    out = rainbow4trade_forward(obs, packed, softmax=SOFTMAX)
    out = jax.block_until_ready(out)

    ref = jax.block_until_ready(reference_forward(obs, params, softmax=SOFTMAX))
    assert out.shape == (B, OUT)
    assert jnp.allclose(out, ref, atol=2e-2, rtol=2e-2), "mismatch vs reference"

    print("KERNEL_OK")
</pallas_src>

<mosaic_0001>
module attributes {stable_mosaic.version = 11 : i64} {
  func.func @_gru_fc_kernel(%arg0: memref<8x128xf32, #tpu.memory_space<vmem>>, %arg1: memref<80x256xbf16, #tpu.memory_space<vmem>>, %arg2: memref<48x256xf32, #tpu.memory_space<vmem>>, %arg3: memref<8x256xf32, #tpu.memory_space<vmem>>) attributes {dimension_semantics = [], scalar_prefetch = 0 : i64, scratch_operands = 0 : i64, tpu.core_type = #tpu.core_type<tc>} {
    %c0 = arith.constant 0 : index
    %c0_0 = arith.constant 0 : index
    %0 = vector.load %arg1[%c0, %c0_0] : memref<80x256xbf16, #tpu.memory_space<vmem>>, vector<80x256xbf16>
    %c0_1 = arith.constant 0 : index
    %c0_2 = arith.constant 0 : index
    %1 = vector.load %arg2[%c0_1, %c0_2] : memref<48x256xf32, #tpu.memory_space<vmem>>, vector<48x256xf32>
    %2 = vector.extract_strided_slice %1 {offsets = [0, 0], sizes = [1, 256], strides = [1, 1]} : vector<48x256xf32> to vector<1x256xf32>
    %3 = vector.extract_strided_slice %1 {offsets = [8, 0], sizes = [1, 256], strides = [1, 1]} : vector<48x256xf32> to vector<1x256xf32>
    %4 = vector.extract_strided_slice %1 {offsets = [16, 0], sizes = [32, 256], strides = [1, 1]} : vector<48x256xf32> to vector<32x256xf32>
    %c0_3 = arith.constant 0 : index
    %c0_4 = arith.constant 0 : index
    %5 = vector.load %arg0[%c0_3, %c0_4] : memref<8x128xf32, #tpu.memory_space<vmem>>, vector<8x128xf32>
    %6 = vector.shape_cast %2 : vector<1x256xf32> to vector<1x256xf32>
    %7 = vector.broadcast %6 : vector<1x256xf32> to vector<8x256xf32>
    %8 = vector.extract_strided_slice %5 {offsets = [0, 0], sizes = [8, 16], strides = [1, 1]} : vector<8x128xf32> to vector<8x16xf32>
    %cst = arith.constant 0.000000e+00 : f32
    %9 = vector.broadcast %cst : f32 to vector<8x64xf32>
    %10 = tpu.concatenate %8, %9 in 1 : vector<8x16xf32>, vector<8x64xf32> -> vector<8x80xf32>
    %11 = arith.truncf %10 : vector<8x80xf32> to vector<8x80xbf16>
    %cst_5 = arith.constant dense<0.000000e+00> : vector<8x256xf32>
    %12 = tpu.matmul %11, %0, %cst_5 {dimension_numbers = #tpu.dot_dimension_numbers<[1], [0], [0], [1], [0, 0, 1, 1], [], []>} : vector<8x80xbf16>, vector<80x256xbf16>, vector<8x256xf32> -> vector<8x256xf32>
    %13 = arith.addf %12, %7 : vector<8x256xf32>
    %14 = vector.extract_strided_slice %13 {offsets = [0, 128], sizes = [8, 128], strides = [1, 1]} : vector<8x256xf32> to vector<8x128xf32>
    %cst_6 = arith.constant 0.000000e+00 : f32
    %15 = vector.broadcast %cst_6 : f32 to vector<8x32xf32>
    %16 = vector.extract_strided_slice %14 {offsets = [0, 0], sizes = [8, 64], strides = [1, 1]} : vector<8x128xf32> to vector<8x64xf32>
    %cst_7 = arith.constant 5.000000e-01 : f32
    %17 = vector.broadcast %cst_7 : f32 to vector<8x64xf32>
    %18 = arith.mulf %17, %16 : vector<8x64xf32>
    %19 = math.tanh %18 : vector<8x64xf32>
    %cst_8 = arith.constant 5.000000e-01 : f32
    %20 = vector.broadcast %cst_8 : f32 to vector<8x64xf32>
    %21 = arith.mulf %20, %19 : vector<8x64xf32>
    %cst_9 = arith.constant 5.000000e-01 : f32
    %22 = vector.broadcast %cst_9 : f32 to vector<8x64xf32>
    %23 = arith.addf %21, %22 : vector<8x64xf32>
    %24 = vector.extract_strided_slice %23 {offsets = [0, 0], sizes = [8, 32], strides = [1, 1]} : vector<8x64xf32> to vector<8x32xf32>
    %25 = vector.extract_strided_slice %23 {offsets = [0, 32], sizes = [8, 32], strides = [1, 1]} : vector<8x64xf32> to vector<8x32xf32>
    %26 = vector.extract_strided_slice %14 {offsets = [0, 64], sizes = [8, 32], strides = [1, 1]} : vector<8x128xf32> to vector<8x32xf32>
    %27 = vector.extract_strided_slice %14 {offsets = [0, 96], sizes = [8, 32], strides = [1, 1]} : vector<8x128xf32> to vector<8x32xf32>
    %28 = arith.mulf %24, %27 : vector<8x32xf32>
    %29 = arith.addf %26, %28 : vector<8x32xf32>
    %30 = math.tanh %29 : vector<8x32xf32>
    %cst_10 = arith.constant 1.000000e+00 : f32
    %31 = vector.broadcast %cst_10 : f32 to vector<8x32xf32>
    %32 = arith.subf %31, %25 : vector<8x32xf32>
    %33 = arith.mulf %32, %30 : vector<8x32xf32>
    %34 = vector.extract_strided_slice %5 {offsets = [0, 16], sizes = [8, 16], strides = [1, 1]} : vector<8x128xf32> to vector<8x16xf32>
    %35 = tpu.concatenate %34, %33, %15 in 1 : vector<8x16xf32>, vector<8x32xf32>, vector<8x32xf32> -> vector<8x80xf32>
    %36 = arith.truncf %35 : vector<8x80xf32> to vector<8x80xbf16>
    %cst_11 = arith.constant dense<0.000000e+00> : vector<8x256xf32>
    %37 = tpu.matmul %36, %0, %cst_11 {dimension_numbers = #tpu.dot_dimension_numbers<[1], [0], [0], [1], [0, 0, 1, 1], [], []>} : vector<8x80xbf16>, vector<80x256xbf16>, vector<8x256xf32> -> vector<8x256xf32>
    %38 = arith.addf %37, %7 : vector<8x256xf32>
    %39 = vector.extract_strided_slice %38 {offsets = [0, 0], sizes = [8, 64], strides = [1, 1]} : vector<8x256xf32> to vector<8x64xf32>
    %cst_12 = arith.constant 5.000000e-01 : f32
    %40 = vector.broadcast %cst_12 : f32 to vector<8x64xf32>
    %41 = arith.mulf %40, %39 : vector<8x64xf32>
    %42 = math.tanh %41 : vector<8x64xf32>
    %cst_13 = arith.constant 5.000000e-01 : f32
    %43 = vector.broadcast %cst_13 : f32 to vector<8x64xf32>
    %44 = arith.mulf %43, %42 : vector<8x64xf32>
    %cst_14 = arith.constant 5.000000e-01 : f32
    %45 = vector.broadcast %cst_14 : f32 to vector<8x64xf32>
    %46 = arith.addf %44, %45 : vector<8x64xf32>
    %47 = vector.extract_strided_slice %46 {offsets = [0, 0], sizes = [8, 32], strides = [1, 1]} : vector<8x64xf32> to vector<8x32xf32>
    %48 = vector.extract_strided_slice %46 {offsets = [0, 32], sizes = [8, 32], strides = [1, 1]} : vector<8x64xf32> to vector<8x32xf32>
    %49 = vector.extract_strided_slice %38 {offsets = [0, 64], sizes = [8, 32], strides = [1, 1]} : vector<8x256xf32> to vector<8x32xf32>
    %50 = vector.extract_strided_slice %38 {offsets = [0, 96], sizes = [8, 32], strides = [1, 1]} : vector<8x256xf32> to vector<8x32xf32>
    %51 = arith.mulf %47, %50 : vector<8x32xf32>
    %52 = arith.addf %49, %51 : vector<8x32xf32>
    %53 = math.tanh %52 : vector<8x32xf32>
    %cst_15 = arith.constant 1.000000e+00 : f32
    %54 = vector.broadcast %cst_15 : f32 to vector<8x32xf32>
    %55 = arith.subf %54, %48 : vector<8x32xf32>
    %56 = arith.mulf %55, %53 : vector<8x32xf32>
    %57 = vector.extract_strided_slice %38 {offsets = [0, 128], sizes = [8, 128], strides = [1, 1]} : vector<8x256xf32> to vector<8x128xf32>
    %58 = vector.extract_strided_slice %57 {offsets = [0, 0], sizes = [8, 64], strides = [1, 1]} : vector<8x128xf32> to vector<8x64xf32>
    %cst_16 = arith.constant 5.000000e-01 : f32
    %59 = vector.broadcast %cst_16 : f32 to vector<8x64xf32>
    %60 = arith.mulf %59, %58 : vector<8x64xf32>
    %61 = math.tanh %60 : vector<8x64xf32>
    %cst_17 = arith.constant 5.000000e-01 : f32
    %62 = vector.broadcast %cst_17 : f32 to vector<8x64xf32>
    %63 = arith.mulf %62, %61 : vector<8x64xf32>
    %cst_18 = arith.constant 5.000000e-01 : f32
    %64 = vector.broadcast %cst_18 : f32 to vector<8x64xf32>
    %65 = arith.addf %63, %64 : vector<8x64xf32>
    %66 = vector.extract_strided_slice %65 {offsets = [0, 0], sizes = [8, 32], strides = [1, 1]} : vector<8x64xf32> to vector<8x32xf32>
    %67 = vector.extract_strided_slice %65 {offsets = [0, 32], sizes = [8, 32], strides = [1, 1]} : vector<8x64xf32> to vector<8x32xf32>
    %68 = vector.extract_strided_slice %57 {offsets = [0, 64], sizes = [8, 32], strides = [1, 1]} : vector<8x128xf32> to vector<8x32xf32>
    %69 = vector.extract_strided_slice %57 {offsets = [0, 96], sizes = [8, 32], strides = [1, 1]} : vector<8x128xf32> to vector<8x32xf32>
    %70 = arith.mulf %66, %69 : vector<8x32xf32>
    %71 = arith.addf %68, %70 : vector<8x32xf32>
    %72 = math.tanh %71 : vector<8x32xf32>
    %cst_19 = arith.constant 1.000000e+00 : f32
    %73 = vector.broadcast %cst_19 : f32 to vector<8x32xf32>
    %74 = arith.subf %73, %67 : vector<8x32xf32>
    %75 = arith.mulf %74, %72 : vector<8x32xf32>
    %76 = arith.mulf %67, %33 : vector<8x32xf32>
    %77 = arith.addf %75, %76 : vector<8x32xf32>
    %78 = vector.extract_strided_slice %5 {offsets = [0, 32], sizes = [8, 16], strides = [1, 1]} : vector<8x128xf32> to vector<8x16xf32>
    %79 = tpu.concatenate %78, %77, %56 in 1 : vector<8x16xf32>, vector<8x32xf32>, vector<8x32xf32> -> vector<8x80xf32>
    %80 = arith.truncf %79 : vector<8x80xf32> to vector<8x80xbf16>
    %cst_20 = arith.constant dense<0.000000e+00> : vector<8x256xf32>
    %81 = tpu.matmul %80, %0, %cst_20 {dimension_numbers = #tpu.dot_dimension_numbers<[1], [0], [0], [1], [0, 0, 1, 1], [], []>} : vector<8x80xbf16>, vector<80x256xbf16>, vector<8x256xf32> -> vector<8x256xf32>
    %82 = arith.addf %81, %7 : vector<8x256xf32>
    %83 = vector.extract_strided_slice %82 {offsets = [0, 0], sizes = [8, 64], strides = [1, 1]} : vector<8x256xf32> to vector<8x64xf32>
    %cst_21 = arith.constant 5.000000e-01 : f32
    %84 = vector.broadcast %cst_21 : f32 to vector<8x64xf32>
    %85 = arith.mulf %84, %83 : vector<8x64xf32>
    %86 = math.tanh %85 : vector<8x64xf32>
    %cst_22 = arith.constant 5.000000e-01 : f32
    %87 = vector.broadcast %cst_22 : f32 to vector<8x64xf32>
    %88 = arith.mulf %87, %86 : vector<8x64xf32>
    %cst_23 = arith.constant 5.000000e-01 : f32
    %89 = vector.broadcast %cst_23 : f32 to vector<8x64xf32>
    %90 = arith.addf %88, %89 : vector<8x64xf32>
    %91 = vector.extract_strided_slice %90 {offsets = [0, 0], sizes = [8, 32], strides = [1, 1]} : vector<8x64xf32> to vector<8x32xf32>
    %92 = vector.extract_strided_slice %90 {offsets = [0, 32], sizes = [8, 32], strides = [1, 1]} : vector<8x64xf32> to vector<8x32xf32>
    %93 = vector.extract_strided_slice %82 {offsets = [0, 64], sizes = [8, 32], strides = [1, 1]} : vector<8x256xf32> to vector<8x32xf32>
    %94 = vector.extract_strided_slice %82 {offsets = [0, 96], sizes = [8, 32], strides = [1, 1]} : vector<8x256xf32> to vector<8x32xf32>
    %95 = arith.mulf %91, %94 : vector<8x32xf32>
    %96 = arith.addf %93, %95 : vector<8x32xf32>
    %97 = math.tanh %96 : vector<8x32xf32>
    %cst_24 = arith.constant 1.000000e+00 : f32
    %98 = vector.broadcast %cst_24 : f32 to vector<8x32xf32>
    %99 = arith.subf %98, %92 : vector<8x32xf32>
    %100 = arith.mulf %99, %97 : vector<8x32xf32>
    %101 = arith.mulf %92, %56 : vector<8x32xf32>
    %102 = arith.addf %100, %101 : vector<8x32xf32>
    %103 = vector.extract_strided_slice %82 {offsets = [0, 128], sizes = [8, 128], strides = [1, 1]} : vector<8x256xf32> to vector<8x128xf32>
    %104 = vector.extract_strided_slice %103 {offsets = [0, 0], sizes = [8, 64], strides = [1, 1]} : vector<8x128xf32> to vector<8x64xf32>
    %cst_25 = arith.constant 5.000000e-01 : f32
    %105 = vector.broadcast %cst_25 : f32 to vector<8x64xf32>
    %106 = arith.mulf %105, %104 : vector<8x64xf32>
    %107 = math.tanh %106 : vector<8x64xf32>
    %cst_26 = arith.constant 5.000000e-01 : f32
    %108 = vector.broadcast %cst_26 : f32 to vector<8x64xf32>
    %109 = arith.mulf %108, %107 : vector<8x64xf32>
    %cst_27 = arith.constant 5.000000e-01 : f32
    %110 = vector.broadcast %cst_27 : f32 to vector<8x64xf32>
    %111 = arith.addf %109, %110 : vector<8x64xf32>
    %112 = vector.extract_strided_slice %111 {offsets = [0, 0], sizes = [8, 32], strides = [1, 1]} : vector<8x64xf32> to vector<8x32xf32>
    %113 = vector.extract_strided_slice %111 {offsets = [0, 32], sizes = [8, 32], strides = [1, 1]} : vector<8x64xf32> to vector<8x32xf32>
    %114 = vector.extract_strided_slice %103 {offsets = [0, 64], sizes = [8, 32], strides = [1, 1]} : vector<8x128xf32> to vector<8x32xf32>
    %115 = vector.extract_strided_slice %103 {offsets = [0, 96], sizes = [8, 32], strides = [1, 1]} : vector<8x128xf32> to vector<8x32xf32>
    %116 = arith.mulf %112, %115 : vector<8x32xf32>
    %117 = arith.addf %114, %116 : vector<8x32xf32>
    %118 = math.tanh %117 : vector<8x32xf32>
    %cst_28 = arith.constant 1.000000e+00 : f32
    %119 = vector.broadcast %cst_28 : f32 to vector<8x32xf32>
    %120 = arith.subf %119, %113 : vector<8x32xf32>
    %121 = arith.mulf %120, %118 : vector<8x32xf32>
    %122 = arith.mulf %113, %77 : vector<8x32xf32>
    %123 = arith.addf %121, %122 : vector<8x32xf32>
    %124 = vector.extract_strided_slice %5 {offsets = [0, 48], sizes = [8, 16], strides = [1, 1]} : vector<8x128xf32> to vector<8x16xf32>
    %125 = tpu.concatenate %124, %123, %102 in 1 : vector<8x16xf32>, vector<8x32xf32>, vector<8x32xf32> -> vector<8x80xf32>
    %126 = arith.truncf %125 : vector<8x80xf32> to vector<8x80xbf16>
    %cst_29 = arith.constant dense<0.000000e+00> : vector<8x256xf32>
    %127 = tpu.matmul %126, %0, %cst_29 {dimension_numbers = #tpu.dot_dimension_numbers<[1], [0], [0], [1], [0, 0, 1, 1], [], []>} : vector<8x80xbf16>, vector<80x256xbf16>, vector<8x256xf32> -> vector<8x256xf32>
    %128 = arith.addf %127, %7 : vector<8x256xf32>
    %129 = vector.extract_strided_slice %128 {offsets = [0, 0], sizes = [8, 64], strides = [1, 1]} : vector<8x256xf32> to vector<8x64xf32>
    %cst_30 = arith.constant 5.000000e-01 : f32
    %130 = vector.broadcast %cst_30 : f32 to vector<8x64xf32>
    %131 = arith.mulf %130, %129 : vector<8x64xf32>
    %132 = math.tanh %131 : vector<8x64xf32>
    %cst_31 = arith.constant 5.000000e-01 : f32
    %133 = vector.broadcast %cst_31 : f32 to vector<8x64xf32>
    %134 = arith.mulf %133, %132 : vector<8x64xf32>
    %cst_32 = arith.constant 5.000000e-01 : f32
    %135 = vector.broadcast %cst_32 : f32 to vector<8x64xf32>
    %136 = arith.addf %134, %135 : vector<8x64xf32>
    %137 = vector.extract_strided_slice %136 {offsets = [0, 0], sizes = [8, 32], strides = [1, 1]} : vector<8x64xf32> to vector<8x32xf32>
    %138 = vector.extract_strided_slice %136 {offsets = [0, 32], sizes = [8, 32], strides = [1, 1]} : vector<8x64xf32> to vector<8x32xf32>
    %139 = vector.extract_strided_slice %128 {offsets = [0, 64], sizes = [8, 32], strides = [1, 1]} : vector<8x256xf32> to vector<8x32xf32>
    %140 = vector.extract_strided_slice %128 {offsets = [0, 96], sizes = [8, 32], strides = [1, 1]} : vector<8x256xf32> to vector<8x32xf32>
    %141 = arith.mulf %137, %140 : vector<8x32xf32>
    %142 = arith.addf %139, %141 : vector<8x32xf32>
    %143 = math.tanh %142 : vector<8x32xf32>
    %cst_33 = arith.constant 1.000000e+00 : f32
    %144 = vector.broadcast %cst_33 : f32 to vector<8x32xf32>
    %145 = arith.subf %144, %138 : vector<8x32xf32>
    %146 = arith.mulf %145, %143 : vector<8x32xf32>
    %147 = arith.mulf %138, %102 : vector<8x32xf32>
    %148 = arith.addf %146, %147 : vector<8x32xf32>
    %149 = vector.extract_strided_slice %128 {offsets = [0, 128], sizes = [8, 128], strides = [1, 1]} : vector<8x256xf32> to vector<8x128xf32>
    %150 = vector.extract_strided_slice %149 {offsets = [0, 0], sizes = [8, 64], strides = [1, 1]} : vector<8x128xf32> to vector<8x64xf32>
    %cst_34 = arith.constant 5.000000e-01 : f32
    %151 = vector.broadcast %cst_34 : f32 to vector<8x64xf32>
    %152 = arith.mulf %151, %150 : vector<8x64xf32>
    %153 = math.tanh %152 : vector<8x64xf32>
    %cst_35 = arith.constant 5.000000e-01 : f32
    %154 = vector.broadcast %cst_35 : f32 to vector<8x64xf32>
    %155 = arith.mulf %154, %153 : vector<8x64xf32>
    %cst_36 = arith.constant 5.000000e-01 : f32
    %156 = vector.broadcast %cst_36 : f32 to vector<8x64xf32>
    %157 = arith.addf %155, %156 : vector<8x64xf32>
    %158 = vector.extract_strided_slice %157 {offsets = [0, 0], sizes = [8, 32], strides = [1, 1]} : vector<8x64xf32> to vector<8x32xf32>
    %159 = vector.extract_strided_slice %157 {offsets = [0, 32], sizes = [8, 32], strides = [1, 1]} : vector<8x64xf32> to vector<8x32xf32>
    %160 = vector.extract_strided_slice %149 {offsets = [0, 64], sizes = [8, 32], strides = [1, 1]} : vector<8x128xf32> to vector<8x32xf32>
    %161 = vector.extract_strided_slice %149 {offsets = [0, 96], sizes = [8, 32], strides = [1, 1]} : vector<8x128xf32> to vector<8x32xf32>
    %162 = arith.mulf %158, %161 : vector<8x32xf32>
    %163 = arith.addf %160, %162 : vector<8x32xf32>
    %164 = math.tanh %163 : vector<8x32xf32>
    %cst_37 = arith.constant 1.000000e+00 : f32
    %165 = vector.broadcast %cst_37 : f32 to vector<8x32xf32>
    %166 = arith.subf %165, %159 : vector<8x32xf32>
    %167 = arith.mulf %166, %164 : vector<8x32xf32>
    %168 = arith.mulf %159, %123 : vector<8x32xf32>
    %169 = arith.addf %167, %168 : vector<8x32xf32>
    %170 = vector.extract_strided_slice %5 {offsets = [0, 64], sizes = [8, 16], strides = [1, 1]} : vector<8x128xf32> to vector<8x16xf32>
    %171 = tpu.concatenate %170, %169, %148 in 1 : vector<8x16xf32>, vector<8x32xf32>, vector<8x32xf32> -> vector<8x80xf32>
    %172 = arith.truncf %171 : vector<8x80xf32> to vector<8x80xbf16>
    %cst_38 = arith.constant dense<0.000000e+00> : vector<8x256xf32>
    %173 = tpu.matmul %172, %0, %cst_38 {dimension_numbers = #tpu.dot_dimension_numbers<[1], [0], [0], [1], [0, 0, 1, 1], [], []>} : vector<8x80xbf16>, vector<80x256xbf16>, vector<8x256xf32> -> vector<8x256xf32>
    %174 = arith.addf %173, %7 : vector<8x256xf32>
    %175 = vector.extract_strided_slice %174 {offsets = [0, 0], sizes = [8, 64], strides = [1, 1]} : vector<8x256xf32> to vector<8x64xf32>
    %cst_39 = arith.constant 5.000000e-01 : f32
    %176 = vector.broadcast %cst_39 : f32 to vector<8x64xf32>
    %177 = arith.mulf %176, %175 : vector<8x64xf32>
    %178 = math.tanh %177 : vector<8x64xf32>
    %cst_40 = arith.constant 5.000000e-01 : f32
    %179 = vector.broadcast %cst_40 : f32 to vector<8x64xf32>
    %180 = arith.mulf %179, %178 : vector<8x64xf32>
    %cst_41 = arith.constant 5.000000e-01 : f32
    %181 = vector.broadcast %cst_41 : f32 to vector<8x64xf32>
    %182 = arith.addf %180, %181 : vector<8x64xf32>
    %183 = vector.extract_strided_slice %182 {offsets = [0, 0], sizes = [8, 32], strides = [1, 1]} : vector<8x64xf32> to vector<8x32xf32>
    %184 = vector.extract_strided_slice %182 {offsets = [0, 32], sizes = [8, 32], strides = [1, 1]} : vector<8x64xf32> to vector<8x32xf32>
    %185 = vector.extract_strided_slice %174 {offsets = [0, 64], sizes = [8, 32], strides = [1, 1]} : vector<8x256xf32> to vector<8x32xf32>
    %186 = vector.extract_strided_slice %174 {offsets = [0, 96], sizes = [8, 32], strides = [1, 1]} : vector<8x256xf32> to vector<8x32xf32>
    %187 = arith.mulf %183, %186 : vector<8x32xf32>
    %188 = arith.addf %185, %187 : vector<8x32xf32>
    %189 = math.tanh %188 : vector<8x32xf32>
    %cst_42 = arith.constant 1.000000e+00 : f32
    %190 = vector.broadcast %cst_42 : f32 to vector<8x32xf32>
    %191 = arith.subf %190, %184 : vector<8x32xf32>
    %192 = arith.mulf %191, %189 : vector<8x32xf32>
    %193 = arith.mulf %184, %148 : vector<8x32xf32>
    %194 = arith.addf %192, %193 : vector<8x32xf32>
    %195 = vector.extract_strided_slice %174 {offsets = [0, 128], sizes = [8, 128], strides = [1, 1]} : vector<8x256xf32> to vector<8x128xf32>
    %196 = vector.extract_strided_slice %195 {offsets = [0, 0], sizes = [8, 64], strides = [1, 1]} : vector<8x128xf32> to vector<8x64xf32>
    %cst_43 = arith.constant 5.000000e-01 : f32
    %197 = vector.broadcast %cst_43 : f32 to vector<8x64xf32>
    %198 = arith.mulf %197, %196 : vector<8x64xf32>
    %199 = math.tanh %198 : vector<8x64xf32>
    %cst_44 = arith.constant 5.000000e-01 : f32
    %200 = vector.broadcast %cst_44 : f32 to vector<8x64xf32>
    %201 = arith.mulf %200, %199 : vector<8x64xf32>
    %cst_45 = arith.constant 5.000000e-01 : f32
    %202 = vector.broadcast %cst_45 : f32 to vector<8x64xf32>
    %203 = arith.addf %201, %202 : vector<8x64xf32>
    %204 = vector.extract_strided_slice %203 {offsets = [0, 0], sizes = [8, 32], strides = [1, 1]} : vector<8x64xf32> to vector<8x32xf32>
    %205 = vector.extract_strided_slice %203 {offsets = [0, 32], sizes = [8, 32], strides = [1, 1]} : vector<8x64xf32> to vector<8x32xf32>
    %206 = vector.extract_strided_slice %195 {offsets = [0, 64], sizes = [8, 32], strides = [1, 1]} : vector<8x128xf32> to vector<8x32xf32>
    %207 = vector.extract_strided_slice %195 {offsets = [0, 96], sizes = [8, 32], strides = [1, 1]} : vector<8x128xf32> to vector<8x32xf32>
    %208 = arith.mulf %204, %207 : vector<8x32xf32>
    %209 = arith.addf %206, %208 : vector<8x32xf32>
    %210 = math.tanh %209 : vector<8x32xf32>
    %cst_46 = arith.constant 1.000000e+00 : f32
    %211 = vector.broadcast %cst_46 : f32 to vector<8x32xf32>
    %212 = arith.subf %211, %205 : vector<8x32xf32>
    %213 = arith.mulf %212, %210 : vector<8x32xf32>
    %214 = arith.mulf %205, %169 : vector<8x32xf32>
    %215 = arith.addf %213, %214 : vector<8x32xf32>
    %216 = vector.extract_strided_slice %5 {offsets = [0, 80], sizes = [8, 16], strides = [1, 1]} : vector<8x128xf32> to vector<8x16xf32>
    %217 = tpu.concatenate %216, %215, %194 in 1 : vector<8x16xf32>, vector<8x32xf32>, vector<8x32xf32> -> vector<8x80xf32>
    %218 = arith.truncf %217 : vector<8x80xf32> to vector<8x80xbf16>
    %cst_47 = arith.constant dense<0.000000e+00> : vector<8x256xf32>
    %219 = tpu.matmul %218, %0, %cst_47 {dimension_numbers = #tpu.dot_dimension_numbers<[1], [0], [0], [1], [0, 0, 1, 1], [], []>} : vector<8x80xbf16>, vector<80x256xbf16>, vector<8x256xf32> -> vector<8x256xf32>
    %220 = arith.addf %219, %7 : vector<8x256xf32>
    %221 = vector.extract_strided_slice %220 {offsets = [0, 0], sizes = [8, 64], strides = [1, 1]} : vector<8x256xf32> to vector<8x64xf32>
    %cst_48 = arith.constant 5.000000e-01 : f32
    %222 = vector.broadcast %cst_48 : f32 to vector<8x64xf32>
    %223 = arith.mulf %222, %221 : vector<8x64xf32>
    %224 = math.tanh %223 : vector<8x64xf32>
    %cst_49 = arith.constant 5.000000e-01 : f32
    %225 = vector.broadcast %cst_49 : f32 to vector<8x64xf32>
    %226 = arith.mulf %225, %224 : vector<8x64xf32>
    %cst_50 = arith.constant 5.000000e-01 : f32
    %227 = vector.broadcast %cst_50 : f32 to vector<8x64xf32>
    %228 = arith.addf %226, %227 : vector<8x64xf32>
    %229 = vector.extract_strided_slice %228 {offsets = [0, 0], sizes = [8, 32], strides = [1, 1]} : vector<8x64xf32> to vector<8x32xf32>
    %230 = vector.extract_strided_slice %228 {offsets = [0, 32], sizes = [8, 32], strides = [1, 1]} : vector<8x64xf32> to vector<8x32xf32>
    %231 = vector.extract_strided_slice %220 {offsets = [0, 64], sizes = [8, 32], strides = [1, 1]} : vector<8x256xf32> to vector<8x32xf32>
    %232 = vector.extract_strided_slice %220 {offsets = [0, 96], sizes = [8, 32], strides = [1, 1]} : vector<8x256xf32> to vector<8x32xf32>
    %233 = arith.mulf %229, %232 : vector<8x32xf32>
    %234 = arith.addf %231, %233 : vector<8x32xf32>
    %235 = math.tanh %234 : vector<8x32xf32>
    %cst_51 = arith.constant 1.000000e+00 : f32
    %236 = vector.broadcast %cst_51 : f32 to vector<8x32xf32>
    %237 = arith.subf %236, %230 : vector<8x32xf32>
    %238 = arith.mulf %237, %235 : vector<8x32xf32>
    %239 = arith.mulf %230, %194 : vector<8x32xf32>
    %240 = arith.addf %238, %239 : vector<8x32xf32>
    %241 = vector.extract_strided_slice %220 {offsets = [0, 128], sizes = [8, 128], strides = [1, 1]} : vector<8x256xf32> to vector<8x128xf32>
    %242 = vector.extract_strided_slice %241 {offsets = [0, 0], sizes = [8, 64], strides = [1, 1]} : vector<8x128xf32> to vector<8x64xf32>
    %cst_52 = arith.constant 5.000000e-01 : f32
    %243 = vector.broadcast %cst_52 : f32 to vector<8x64xf32>
    %244 = arith.mulf %243, %242 : vector<8x64xf32>
    %245 = math.tanh %244 : vector<8x64xf32>
    %cst_53 = arith.constant 5.000000e-01 : f32
    %246 = vector.broadcast %cst_53 : f32 to vector<8x64xf32>
    %247 = arith.mulf %246, %245 : vector<8x64xf32>
    %cst_54 = arith.constant 5.000000e-01 : f32
    %248 = vector.broadcast %cst_54 : f32 to vector<8x64xf32>
    %249 = arith.addf %247, %248 : vector<8x64xf32>
    %250 = vector.extract_strided_slice %249 {offsets = [0, 0], sizes = [8, 32], strides = [1, 1]} : vector<8x64xf32> to vector<8x32xf32>
    %251 = vector.extract_strided_slice %249 {offsets = [0, 32], sizes = [8, 32], strides = [1, 1]} : vector<8x64xf32> to vector<8x32xf32>
    %252 = vector.extract_strided_slice %241 {offsets = [0, 64], sizes = [8, 32], strides = [1, 1]} : vector<8x128xf32> to vector<8x32xf32>
    %253 = vector.extract_strided_slice %241 {offsets = [0, 96], sizes = [8, 32], strides = [1, 1]} : vector<8x128xf32> to vector<8x32xf32>
    %254 = arith.mulf %250, %253 : vector<8x32xf32>
    %255 = arith.addf %252, %254 : vector<8x32xf32>
    %256 = math.tanh %255 : vector<8x32xf32>
    %cst_55 = arith.constant 1.000000e+00 : f32
    %257 = vector.broadcast %cst_55 : f32 to vector<8x32xf32>
    %258 = arith.subf %257, %251 : vector<8x32xf32>
    %259 = arith.mulf %258, %256 : vector<8x32xf32>
    %260 = arith.mulf %251, %215 : vector<8x32xf32>
    %261 = arith.addf %259, %260 : vector<8x32xf32>
    %262 = vector.extract_strided_slice %5 {offsets = [0, 96], sizes = [8, 16], strides = [1, 1]} : vector<8x128xf32> to vector<8x16xf32>
    %263 = tpu.concatenate %262, %261, %240 in 1 : vector<8x16xf32>, vector<8x32xf32>, vector<8x32xf32> -> vector<8x80xf32>
    %264 = arith.truncf %263 : vector<8x80xf32> to vector<8x80xbf16>
    %cst_56 = arith.constant dense<0.000000e+00> : vector<8x256xf32>
    %265 = tpu.matmul %264, %0, %cst_56 {dimension_numbers = #tpu.dot_dimension_numbers<[1], [0], [0], [1], [0, 0, 1, 1], [], []>} : vector<8x80xbf16>, vector<80x256xbf16>, vector<8x256xf32> -> vector<8x256xf32>
    %266 = arith.addf %265, %7 : vector<8x256xf32>
    %267 = vector.extract_strided_slice %266 {offsets = [0, 0], sizes = [8, 64], strides = [1, 1]} : vector<8x256xf32> to vector<8x64xf32>
    %cst_57 = arith.constant 5.000000e-01 : f32
    %268 = vector.broadcast %cst_57 : f32 to vector<8x64xf32>
    %269 = arith.mulf %268, %267 : vector<8x64xf32>
    %270 = math.tanh %269 : vector<8x64xf32>
    %cst_58 = arith.constant 5.000000e-01 : f32
    %271 = vector.broadcast %cst_58 : f32 to vector<8x64xf32>
    %272 = arith.mulf %271, %270 : vector<8x64xf32>
    %cst_59 = arith.constant 5.000000e-01 : f32
    %273 = vector.broadcast %cst_59 : f32 to vector<8x64xf32>
    %274 = arith.addf %272, %273 : vector<8x64xf32>
    %275 = vector.extract_strided_slice %274 {offsets = [0, 0], sizes = [8, 32], strides = [1, 1]} : vector<8x64xf32> to vector<8x32xf32>
    %276 = vector.extract_strided_slice %274 {offsets = [0, 32], sizes = [8, 32], strides = [1, 1]} : vector<8x64xf32> to vector<8x32xf32>
    %277 = vector.extract_strided_slice %266 {offsets = [0, 64], sizes = [8, 32], strides = [1, 1]} : vector<8x256xf32> to vector<8x32xf32>
    %278 = vector.extract_strided_slice %266 {offsets = [0, 96], sizes = [8, 32], strides = [1, 1]} : vector<8x256xf32> to vector<8x32xf32>
    %279 = arith.mulf %275, %278 : vector<8x32xf32>
    %280 = arith.addf %277, %279 : vector<8x32xf32>
    %281 = math.tanh %280 : vector<8x32xf32>
    %cst_60 = arith.constant 1.000000e+00 : f32
    %282 = vector.broadcast %cst_60 : f32 to vector<8x32xf32>
    %283 = arith.subf %282, %276 : vector<8x32xf32>
    %284 = arith.mulf %283, %281 : vector<8x32xf32>
    %285 = arith.mulf %276, %240 : vector<8x32xf32>
    %286 = arith.addf %284, %285 : vector<8x32xf32>
    %287 = vector.extract_strided_slice %266 {offsets = [0, 128], sizes = [8, 128], strides = [1, 1]} : vector<8x256xf32> to vector<8x128xf32>
    %288 = vector.extract_strided_slice %287 {offsets = [0, 0], sizes = [8, 64], strides = [1, 1]} : vector<8x128xf32> to vector<8x64xf32>
    %cst_61 = arith.constant 5.000000e-01 : f32
    %289 = vector.broadcast %cst_61 : f32 to vector<8x64xf32>
    %290 = arith.mulf %289, %288 : vector<8x64xf32>
    %291 = math.tanh %290 : vector<8x64xf32>
    %cst_62 = arith.constant 5.000000e-01 : f32
    %292 = vector.broadcast %cst_62 : f32 to vector<8x64xf32>
    %293 = arith.mulf %292, %291 : vector<8x64xf32>
    %cst_63 = arith.constant 5.000000e-01 : f32
    %294 = vector.broadcast %cst_63 : f32 to vector<8x64xf32>
    %295 = arith.addf %293, %294 : vector<8x64xf32>
    %296 = vector.extract_strided_slice %295 {offsets = [0, 0], sizes = [8, 32], strides = [1, 1]} : vector<8x64xf32> to vector<8x32xf32>
    %297 = vector.extract_strided_slice %295 {offsets = [0, 32], sizes = [8, 32], strides = [1, 1]} : vector<8x64xf32> to vector<8x32xf32>
    %298 = vector.extract_strided_slice %287 {offsets = [0, 64], sizes = [8, 32], strides = [1, 1]} : vector<8x128xf32> to vector<8x32xf32>
    %299 = vector.extract_strided_slice %287 {offsets = [0, 96], sizes = [8, 32], strides = [1, 1]} : vector<8x128xf32> to vector<8x32xf32>
    %300 = arith.mulf %296, %299 : vector<8x32xf32>
    %301 = arith.addf %298, %300 : vector<8x32xf32>
    %302 = math.tanh %301 : vector<8x32xf32>
    %cst_64 = arith.constant 1.000000e+00 : f32
    %303 = vector.broadcast %cst_64 : f32 to vector<8x32xf32>
    %304 = arith.subf %303, %297 : vector<8x32xf32>
    %305 = arith.mulf %304, %302 : vector<8x32xf32>
    %306 = arith.mulf %297, %261 : vector<8x32xf32>
    %307 = arith.addf %305, %306 : vector<8x32xf32>
    %308 = vector.extract_strided_slice %5 {offsets = [0, 112], sizes = [8, 16], strides = [1, 1]} : vector<8x128xf32> to vector<8x16xf32>
    %309 = tpu.concatenate %308, %307, %286 in 1 : vector<8x16xf32>, vector<8x32xf32>, vector<8x32xf32> -> vector<8x80xf32>
    %310 = arith.truncf %309 : vector<8x80xf32> to vector<8x80xbf16>
    %cst_65 = arith.constant dense<0.000000e+00> : vector<8x256xf32>
    %311 = tpu.matmul %310, %0, %cst_65 {dimension_numbers = #tpu.dot_dimension_numbers<[1], [0], [0], [1], [0, 0, 1, 1], [], []>} : vector<8x80xbf16>, vector<80x256xbf16>, vector<8x256xf32> -> vector<8x256xf32>
    %312 = arith.addf %311, %7 : vector<8x256xf32>
    %313 = vector.extract_strided_slice %312 {offsets = [0, 0], sizes = [8, 64], strides = [1, 1]} : vector<8x256xf32> to vector<8x64xf32>
    %cst_66 = arith.constant 5.000000e-01 : f32
    %314 = vector.broadcast %cst_66 : f32 to vector<8x64xf32>
    %315 = arith.mulf %314, %313 : vector<8x64xf32>
    %316 = math.tanh %315 : vector<8x64xf32>
    %cst_67 = arith.constant 5.000000e-01 : f32
    %317 = vector.broadcast %cst_67 : f32 to vector<8x64xf32>
    %318 = arith.mulf %317, %316 : vector<8x64xf32>
    %cst_68 = arith.constant 5.000000e-01 : f32
    %319 = vector.broadcast %cst_68 : f32 to vector<8x64xf32>
    %320 = arith.addf %318, %319 : vector<8x64xf32>
    %321 = vector.extract_strided_slice %320 {offsets = [0, 0], sizes = [8, 32], strides = [1, 1]} : vector<8x64xf32> to vector<8x32xf32>
    %322 = vector.extract_strided_slice %320 {offsets = [0, 32], sizes = [8, 32], strides = [1, 1]} : vector<8x64xf32> to vector<8x32xf32>
    %323 = vector.extract_strided_slice %312 {offsets = [0, 64], sizes = [8, 32], strides = [1, 1]} : vector<8x256xf32> to vector<8x32xf32>
    %324 = vector.extract_strided_slice %312 {offsets = [0, 96], sizes = [8, 32], strides = [1, 1]} : vector<8x256xf32> to vector<8x32xf32>
    %325 = arith.mulf %321, %324 : vector<8x32xf32>
    %326 = arith.addf %323, %325 : vector<8x32xf32>
    %327 = math.tanh %326 : vector<8x32xf32>
    %cst_69 = arith.constant 1.000000e+00 : f32
    %328 = vector.broadcast %cst_69 : f32 to vector<8x32xf32>
    %329 = arith.subf %328, %322 : vector<8x32xf32>
    %330 = arith.mulf %329, %327 : vector<8x32xf32>
    %331 = arith.mulf %322, %286 : vector<8x32xf32>
    %332 = arith.addf %330, %331 : vector<8x32xf32>
    %333 = vector.extract_strided_slice %312 {offsets = [0, 128], sizes = [8, 128], strides = [1, 1]} : vector<8x256xf32> to vector<8x128xf32>
    %334 = vector.extract_strided_slice %333 {offsets = [0, 0], sizes = [8, 64], strides = [1, 1]} : vector<8x128xf32> to vector<8x64xf32>
    %cst_70 = arith.constant 5.000000e-01 : f32
    %335 = vector.broadcast %cst_70 : f32 to vector<8x64xf32>
    %336 = arith.mulf %335, %334 : vector<8x64xf32>
    %337 = math.tanh %336 : vector<8x64xf32>
    %cst_71 = arith.constant 5.000000e-01 : f32
    %338 = vector.broadcast %cst_71 : f32 to vector<8x64xf32>
    %339 = arith.mulf %338, %337 : vector<8x64xf32>
    %cst_72 = arith.constant 5.000000e-01 : f32
    %340 = vector.broadcast %cst_72 : f32 to vector<8x64xf32>
    %341 = arith.addf %339, %340 : vector<8x64xf32>
    %342 = vector.extract_strided_slice %341 {offsets = [0, 0], sizes = [8, 32], strides = [1, 1]} : vector<8x64xf32> to vector<8x32xf32>
    %343 = vector.extract_strided_slice %341 {offsets = [0, 32], sizes = [8, 32], strides = [1, 1]} : vector<8x64xf32> to vector<8x32xf32>
    %344 = vector.extract_strided_slice %333 {offsets = [0, 64], sizes = [8, 32], strides = [1, 1]} : vector<8x128xf32> to vector<8x32xf32>
    %345 = vector.extract_strided_slice %333 {offsets = [0, 96], sizes = [8, 32], strides = [1, 1]} : vector<8x128xf32> to vector<8x32xf32>
    %346 = arith.mulf %342, %345 : vector<8x32xf32>
    %347 = arith.addf %344, %346 : vector<8x32xf32>
    %348 = math.tanh %347 : vector<8x32xf32>
    %cst_73 = arith.constant 1.000000e+00 : f32
    %349 = vector.broadcast %cst_73 : f32 to vector<8x32xf32>
    %350 = arith.subf %349, %343 : vector<8x32xf32>
    %351 = arith.mulf %350, %348 : vector<8x32xf32>
    %352 = arith.mulf %343, %307 : vector<8x32xf32>
    %353 = arith.addf %351, %352 : vector<8x32xf32>
    %354 = vector.extract_strided_slice %5 {offsets = [0, 112], sizes = [8, 16], strides = [1, 1]} : vector<8x128xf32> to vector<8x16xf32>
    %355 = tpu.concatenate %354, %353, %332 in 1 : vector<8x16xf32>, vector<8x32xf32>, vector<8x32xf32> -> vector<8x80xf32>
    %356 = arith.truncf %355 : vector<8x80xf32> to vector<8x80xbf16>
    %cst_74 = arith.constant dense<0.000000e+00> : vector<8x256xf32>
    %357 = tpu.matmul %356, %0, %cst_74 {dimension_numbers = #tpu.dot_dimension_numbers<[1], [0], [0], [1], [0, 0, 1, 1], [], []>} : vector<8x80xbf16>, vector<80x256xbf16>, vector<8x256xf32> -> vector<8x256xf32>
    %358 = arith.addf %357, %7 : vector<8x256xf32>
    %359 = vector.extract_strided_slice %358 {offsets = [0, 0], sizes = [8, 64], strides = [1, 1]} : vector<8x256xf32> to vector<8x64xf32>
    %cst_75 = arith.constant 5.000000e-01 : f32
    %360 = vector.broadcast %cst_75 : f32 to vector<8x64xf32>
    %361 = arith.mulf %360, %359 : vector<8x64xf32>
    %362 = math.tanh %361 : vector<8x64xf32>
    %cst_76 = arith.constant 5.000000e-01 : f32
    %363 = vector.broadcast %cst_76 : f32 to vector<8x64xf32>
    %364 = arith.mulf %363, %362 : vector<8x64xf32>
    %cst_77 = arith.constant 5.000000e-01 : f32
    %365 = vector.broadcast %cst_77 : f32 to vector<8x64xf32>
    %366 = arith.addf %364, %365 : vector<8x64xf32>
    %367 = vector.extract_strided_slice %366 {offsets = [0, 0], sizes = [8, 32], strides = [1, 1]} : vector<8x64xf32> to vector<8x32xf32>
    %368 = vector.extract_strided_slice %366 {offsets = [0, 32], sizes = [8, 32], strides = [1, 1]} : vector<8x64xf32> to vector<8x32xf32>
    %369 = vector.extract_strided_slice %358 {offsets = [0, 64], sizes = [8, 32], strides = [1, 1]} : vector<8x256xf32> to vector<8x32xf32>
    %370 = vector.extract_strided_slice %358 {offsets = [0, 96], sizes = [8, 32], strides = [1, 1]} : vector<8x256xf32> to vector<8x32xf32>
    %371 = arith.mulf %367, %370 : vector<8x32xf32>
    %372 = arith.addf %369, %371 : vector<8x32xf32>
    %373 = math.tanh %372 : vector<8x32xf32>
    %cst_78 = arith.constant 1.000000e+00 : f32
    %374 = vector.broadcast %cst_78 : f32 to vector<8x32xf32>
    %375 = arith.subf %374, %368 : vector<8x32xf32>
    %376 = arith.mulf %375, %373 : vector<8x32xf32>
    %377 = arith.mulf %368, %332 : vector<8x32xf32>
    %378 = arith.addf %376, %377 : vector<8x32xf32>
    %cst_79 = arith.constant dense<0.000000e+00> : vector<8x256xf32>
    %379 = tpu.matmul %378, %4, %cst_79 {dimension_numbers = #tpu.dot_dimension_numbers<[1], [0], [0], [1], [0, 0, 1, 1], [], []>} : vector<8x32xf32>, vector<32x256xf32>, vector<8x256xf32> -> vector<8x256xf32>
    %380 = vector.broadcast %3 : vector<1x256xf32> to vector<8x256xf32>
    %381 = arith.addf %379, %380 : vector<8x256xf32>
    %382 = tpu.iota {dimensions = array<i32: 1>} : vector<8x256xi32>
    %c8_i32 = arith.constant 8 : i32
    %383 = vector.broadcast %c8_i32 : i32 to vector<8x256xi32>
    %384 = arith.cmpi slt, %382, %383 : vector<8x256xi32>
    %cst_80 = arith.constant -1.000000e+30 : f32
    %385 = vector.broadcast %cst_80 : f32 to vector<8x256xf32>
    %386 = arith.select %384, %381, %385 : vector<8x256xi1>, vector<8x256xf32>
    %cst_81 = arith.constant dense<0xFF800000> : vector<8xf32>
    %387 = vector.multi_reduction <maximumf>, %386, %cst_81 [1] : vector<8x256xf32> to vector<8xf32>
    %388 = vector.shape_cast %387 : vector<8xf32> to vector<8x1xf32>
    %389 = vector.broadcast %388 : vector<8x1xf32> to vector<8x256xf32>
    %390 = arith.subf %386, %389 : vector<8x256xf32>
    %391 = math.exp %390 : vector<8x256xf32>
    %cst_82 = arith.constant dense<0.000000e+00> : vector<8xf32>
    %392 = vector.multi_reduction <add>, %391, %cst_82 [1] : vector<8x256xf32> to vector<8xf32>
    %393 = vector.shape_cast %392 : vector<8xf32> to vector<8x1xf32>
    %394 = tpu.reciprocal %393 {approx = true} : vector<8x1xf32> -> vector<8x1xf32>
    %395 = vector.broadcast %394 : vector<8x1xf32> to vector<8x256xf32>
    %396 = arith.mulf %391, %395 : vector<8x256xf32>
    %c0_83 = arith.constant 0 : index
    %c0_84 = arith.constant 0 : index
    %397 = vector.load %arg3[%c0_83, %c0_84] : memref<8x256xf32, #tpu.memory_space<vmem>>, vector<8x256xf32>
    tpu.vector_store %arg3[%c0_83, %c0_84], %396 {strides = array<i32>} : memref<8x256xf32, #tpu.memory_space<vmem>>, vector<8x256xf32>,
    return
  }
}

</mosaic_0001>

<llo_original>
// kernel: tpu_custom_call.1
$region0: #{tpu_custom_call.1}
  #allocation0 [shape = 'u32[]', space=smem, size = 0x4, offset = 0x4, fixed_abs, tag = 'smem constant byte address 0x4 - core index']
  #allocation1 [shape = 'u32[72,128]{1,0:T(1,128)}', space=vmem, size = 0x9000, scoped, tag = 'internal scratch']
  %s0 = inlined_call_operand.hbm [shape: f32[8,128], index: 0, kind: input, shape index: {}]
  %s1 = inlined_call_operand.hbm [shape: bf16[80,256], index: 1, kind: input, shape index: {}]
  %s2 = inlined_call_operand.hbm [shape: f32[48,256], index: 2, kind: input, shape index: {}]
  %s3 = inlined_call_operand.hbm [shape: f32[8,256], index: 3, kind: output, shape index: {}]
  %s4 = sld [smem:[#allocation0]]
  $region34: #{tpu_custom_call.1} parent=0
    _
  %s6 = ssub.s32 1, %s4
  %s7 = scalar_select 0, %s6, %s4
  $region1: #{tpu_custom_call.1} parent=0
    #allocation2 [shape = 'u8[4096]{0}', space=vmem, size = 0x1000, scoped, tag = 'input window, operand 0, single buffered']
    #allocation3 [shape = 's32[1]{0}', space=sflag, size = 0x4, scoped, tag = 'scoped memory for tpu_custom_call.1']
    #allocation4 [shape = 's32[1]{0}', space=sflag, size = 0x4, scoped, tag = 'scoped memory for tpu_custom_call.1']
    #allocation5 [shape = 'u8[40960]{0}', space=vmem, size = 0xa000, scoped, tag = 'input window, operand 1, single buffered']
    #allocation6 [shape = 's32[1]{0}', space=sflag, size = 0x4, scoped, tag = 'scoped memory for tpu_custom_call.1']
    #allocation7 [shape = 'u8[49152]{0}', space=vmem, size = 0xc000, scoped, tag = 'input window, operand 2, single buffered']
    #allocation8 [shape = 'u8[8192]{0}', space=vmem, size = 0x2000, scoped, tag = 'output window, operand 0, single buffered']
    %8 = vsyncpa [#allocation3], 0
    %9 = vsyncpa [#allocation6], 0
    %10 = vsyncpa [#allocation4], 0
    // Predicated region
    $region2: #{tpu_custom_call.1} parent=1 // pred_check
      _
    $region3: #{tpu_custom_call.1} parent=1 // pred_check_branch
      %12 = sbr.rel (0) target = $region5
    $region4: #{tpu_custom_call.1} parent=1 // pred_region
      %14 = vsyncadd [#allocation3], 0
      %s16 = sshll.u32 %s0, 4
      %s17 = int_to_ptr.hbm [resolvable:$true] %s16
      %s18 = sshll.u32 [#allocation2], 4
      %s19 = int_to_ptr.vmem [resolvable:$true] %s18
      %21 = dma.hbm_to_vmem [thread:$0]  %s17, 128, %s19, [#allocation3]
    $region5: #{tpu_custom_call.1} parent=1 // pred_fallthru
      _
    // Predicated region
    $region6: #{tpu_custom_call.1} parent=1 // pred_check
      _
    $region7: #{tpu_custom_call.1} parent=1 // pred_check_branch
      %23 = sbr.rel (0) target = $region9
    $region8: #{tpu_custom_call.1} parent=1 // pred_region
      %25 = vsyncadd [#allocation6], 0
      %s26 = sshll.u32 %s1, 4
      %s27 = int_to_ptr.hbm [resolvable:$true] %s26
      %s28 = sshll.u32 [#allocation5], 4
      %s29 = int_to_ptr.vmem [resolvable:$true] %s28
      %34 = dma.hbm_to_vmem [thread:$0]  %s27, 1280, %s29, [#allocation6], 128, 128, 8
    $region9: #{tpu_custom_call.1} parent=1 // pred_fallthru
      _
    // Predicated region
    $region10: #{tpu_custom_call.1} parent=1 // pred_check
      _
    $region11: #{tpu_custom_call.1} parent=1 // pred_check_branch
      %36 = sbr.rel (0) target = $region13
    $region12: #{tpu_custom_call.1} parent=1 // pred_region
      %38 = vsyncadd [#allocation6], 0
      %s39 = sshll.u32 %s2, 4
      %s40 = int_to_ptr.hbm [resolvable:$true] %s39
      %s41 = sshll.u32 [#allocation7], 4
      %s42 = int_to_ptr.vmem [resolvable:$true] %s41
      %47 = dma.hbm_to_vmem [thread:$0]  %s40, 1536, %s42, [#allocation6], 256, 256, 16
    $region13: #{tpu_custom_call.1} parent=1 // pred_fallthru
      _
    // Predicated region
    $region14: #{tpu_custom_call.1} parent=1 // pred_check
      _
    $region15: #{tpu_custom_call.1} parent=1 // pred_check_branch
      %49 = sbr.rel (0) target = $region17
    $region16: #{tpu_custom_call.1} parent=1 // pred_region
      %51 = dma.done [#allocation3], 128
    $region17: #{tpu_custom_call.1} parent=1 // pred_fallthru
      _
    // Predicated region
    $region18: #{tpu_custom_call.1} parent=1 // pred_check
      _
    $region19: #{tpu_custom_call.1} parent=1 // pred_check_branch
      %53 = sbr.rel (0) target = $region21
    $region20: #{tpu_custom_call.1} parent=1 // pred_region
      %55 = dma.done [#allocation6], 1280
    $region21: #{tpu_custom_call.1} parent=1 // pred_fallthru
      _
    // Predicated region
    $region22: #{tpu_custom_call.1} parent=1 // pred_check
      _
    $region23: #{tpu_custom_call.1} parent=1 // pred_check_branch
      %57 = sbr.rel (0) target = $region25
    $region24: #{tpu_custom_call.1} parent=1 // pred_region
      %59 = dma.done [#allocation6], 1536
    $region25: #{tpu_custom_call.1} parent=1 // pred_fallthru
      _
    %v61 = vld [vmem:[#allocation5] sm:$0xff]
    %v62 = vld [vmem:[#allocation5 + $0x8] sm:$0xff]
    %v63 = vld [vmem:[#allocation5 + $0x10] sm:$0xff]
    %v64 = vld [vmem:[#allocation5 + $0x18] sm:$0xff]
    %v65 = vld [vmem:[#allocation5 + $0x20] sm:$0xff]
    %v66 = vld [vmem:[#allocation5 + $0x28] sm:$0xff]
    %v67 = vld [vmem:[#allocation5 + $0x30] sm:$0xff]
    %v68 = vld [vmem:[#allocation5 + $0x38] sm:$0xff]
    %v69 = vld [vmem:[#allocation5 + $0x40] sm:$0xff]
    %v70 = vld [vmem:[#allocation5 + $0x48] sm:$0xff]
    %v71 = vld [vmem:[#allocation7] sm:$0xff]
    %v72 = vld [vmem:[#allocation7 + $0x8] sm:$0xff]
    %v73 = vld [vmem:[#allocation7 + $0x10] sm:$0xff]
    %v74 = vld [vmem:[#allocation7 + $0x18] sm:$0xff]
    %v75 = vld [vmem:[#allocation7 + $0x20] sm:$0xff]
    %v76 = vld [vmem:[#allocation7 + $0x28] sm:$0xff]
    %v77 = vld [vmem:[#allocation7 + $0x30] sm:$0xff]
    %v78 = vld [vmem:[#allocation7 + $0x38] sm:$0xff]
    %v79 = vld [vmem:[#allocation7 + $0x40] sm:$0xff]
    %v80 = vld [vmem:[#allocation7 + $0x48] sm:$0xff]
    %v81 = vld [vmem:[#allocation7 + $0x50] sm:$0xff]
    %v82 = vld [vmem:[#allocation7 + $0x58] sm:$0xff]
    %v83 = vld [vmem:[#allocation2] sm:$0xff]
    %v84 = vperm.slane %v71, 0
    %v85 = vperm.slane %v72, 0
    %vm86 = vcmask 130048
    %v87 = vsel %vm86, %v83, 0.0
    %v88 = vpack.c.bf16 %v87, %v87
    %v99 = vunpack.c.h.b16 %v61
    %v100 = vunpack.c.h.b16 %v62
    %v101 = vunpack.c.h.b16 %v63
    %v102 = vunpack.c.h.b16 %v64
    %v103 = vunpack.c.h.b16 %v65
    %v104 = vunpack.c.h.b16 %v66
    %v105 = vunpack.c.h.b16 %v67
    %v106 = vunpack.c.h.b16 %v68
    %v107 = vunpack.c.h.b16 %v69
    %v108 = vunpack.c.h.b16 %v70
    %v109 = vpack.c.b16 %v100, %v99
    %v110 = vpack.c.b16 %v102, %v101
    %v111 = vpack.c.b16 %v104, %v103
    %v112 = vpack.c.b16 %v106, %v105
    %v113 = vpack.c.b16 %v108, %v107
    %vm119 = vcmask 654336
    %v121 = vsel %vm119, %v88, 0
    %123 = vmatpush.bf16.msra.mxu0 0
    %124 = vmatpush.bf16.msra.mxu0 0
    %125 = vmatpush.bf16.msra.mxu0 0
    %126 = vmatpush.bf16.msra.mxu0 %v113
    %127 = vmatpush.bf16.msra.mxu0 %v112
    %128 = vmatpush.bf16.msra.mxu0 %v111
    %129 = vmatpush.bf16.msra.mxu0 %v110
    %130 = vmatpush.bf16.msra.mxu0 %v109
    %131 = vmatmul.bf16.gmra.mxu0 %v121
    %v132 = vpop.f32.mrf.mxu0
    %v133 = vadd.f32 %v85, %v132
    %v134 = vpop.f32.mrf.mxu0
    %135 = vdwg.mxu0
    %v136 = vmul.f32 %v133, 0.5
    %v137 = vtanh.pop %v136
    %v138 = vmul.f32 %v137, 0.5
    %v139 = vadd.f32 %v138, 0.5
    %141 = vrot.lane.b32.xlu0 %v133, 32
    %v142 = vpop.permute.xlu0 %141
    %v144 = vmul.f32 %v139, %v142
    %146 = vrot.lane.b32.xlu0 %v144, 64
    %v147 = vpop.permute.xlu0 %146
    %v149 = vadd.f32 %v133, %v147
    %v150 = vtanh.pop %v149
    %v151 = vsub.f32 1.0, %v139
    %153 = vrot.lane.b32.xlu0 %v150, 96
    %v154 = vpop.permute.xlu0 %153
    %v156 = vmul.f32 %v151, %v154
    %158 = vrot.lane.b32.xlu0 %v83, 112
    %v159 = vpop.permute.xlu0 %158
    %162 = vrot.lane.b32.xlu0 %v156, 112
    %v163 = vpop.permute.xlu0 %162
    %v165 = vsel %vm86, %v159, %v163
    %vm166 = vcmask 392192
    %v167 = vsel %vm166, %v165, 0.0
    %v168 = vpack.c.bf16 %v167, %v167
    %v169 = vunpack.c.l.b16 %v61
    %v170 = vunpack.c.l.b16 %v62
    %v171 = vunpack.c.l.b16 %v63
    %v172 = vunpack.c.l.b16 %v64
    %v173 = vunpack.c.l.b16 %v65
    %v174 = vunpack.c.l.b16 %v66
    %v175 = vunpack.c.l.b16 %v67
    %v176 = vunpack.c.l.b16 %v68
    %v177 = vunpack.c.l.b16 %v69
    %v178 = vunpack.c.l.b16 %v70
    %v179 = vpack.c.b16 %v170, %v169
    %v180 = vpack.c.b16 %v172, %v171
    %v181 = vpack.c.b16 %v174, %v173
    %v182 = vpack.c.b16 %v176, %v175
    %v183 = vpack.c.b16 %v178, %v177
    %v190 = vsel %vm119, %v168, 0
    %192 = vmatpush.bf16.msra.mxu0 0
    %193 = vmatpush.bf16.msra.mxu0 0
    %194 = vmatpush.bf16.msra.mxu0 0
    %195 = vmatpush.bf16.msra.mxu0 %v183
    %196 = vmatpush.bf16.msra.mxu0 %v182
    %197 = vmatpush.bf16.msra.mxu0 %v181
    %198 = vmatpush.bf16.msra.mxu0 %v180
    %199 = vmatpush.bf16.msra.mxu0 %v179
    %200 = vmatmul.bf16.gmra.mxu0 %v190
    %v201 = vpop.f32.mrf.mxu0
    %v202 = vadd.f32 %v84, %v201
    %v203 = vpop.f32.mrf.mxu0
    %204 = vdwg.mxu0
    %205 = vmatpush.bf16.msra.mxu0 0
    %206 = vmatpush.bf16.msra.mxu0 0
    %207 = vmatpush.bf16.msra.mxu0 0
    %208 = vmatpush.bf16.msra.mxu0 %v113
    %209 = vmatpush.bf16.msra.mxu0 %v112
    %210 = vmatpush.bf16.msra.mxu0 %v111
    %211 = vmatpush.bf16.msra.mxu0 %v110
    %212 = vmatpush.bf16.msra.mxu0 %v109
    %213 = vmatmul.bf16.gmra.mxu0 %v190
    %v214 = vpop.f32.mrf.mxu0
    %v215 = vadd.f32 %v85, %v214
    %v216 = vpop.f32.mrf.mxu0
    %217 = vdwg.mxu0
    %v218 = vmul.f32 %v202, 0.5
    %v219 = vtanh.pop %v218
    %v220 = vmul.f32 %v219, 0.5
    %v221 = vadd.f32 %v220, 0.5
    %223 = vrot.lane.b32.xlu0 %v202, 32
    %v224 = vpop.permute.xlu0 %223
    %v226 = vmul.f32 %v221, %v224
    %228 = vrot.lane.b32.xlu0 %v226, 64
    %v229 = vpop.permute.xlu0 %228
    %v231 = vadd.f32 %v202, %v229
    %v232 = vtanh.pop %v231
    %v233 = vsub.f32 1.0, %v221
    %235 = vrot.lane.b32.xlu0 %v232, 96
    %v236 = vpop.permute.xlu0 %235
    %v238 = vmul.f32 %v233, %v236
    %v239 = vmul.f32 %v215, 0.5
    %v240 = vtanh.pop %v239
    %v241 = vmul.f32 %v240, 0.5
    %v242 = vadd.f32 %v241, 0.5
    %244 = vrot.lane.b32.xlu0 %v215, 32
    %v245 = vpop.permute.xlu0 %244
    %v247 = vmul.f32 %v242, %v245
    %249 = vrot.lane.b32.xlu0 %v247, 64
    %v250 = vpop.permute.xlu0 %249
    %v252 = vadd.f32 %v215, %v250
    %v253 = vtanh.pop %v252
    %v254 = vsub.f32 1.0, %v242
    %256 = vrot.lane.b32.xlu0 %v253, 96
    %v257 = vpop.permute.xlu0 %256
    %v259 = vmul.f32 %v254, %v257
    %v260 = vmul.f32 %v242, %v156
    %v261 = vadd.f32 %v259, %v260
    %262 = vrot.lane.b32.xlu0 %v83, 96
    %v263 = vpop.permute.xlu0 %262
    %266 = vrot.lane.b32.xlu0 %v261, 112
    %v267 = vpop.permute.xlu0 %266
    %270 = vrot.lane.b32.xlu0 %v238, 16
    %v271 = vpop.permute.xlu0 %270
    %v273 = vsel %vm86, %v263, %v267
    %v274 = vsel %vm166, %v273, %v271
    %v275 = vpack.c.bf16 %v274, %v274
    %v277 = vsel %vm119, %v275, 0
    %279 = vmatpush.bf16.msra.mxu0 0
    %280 = vmatpush.bf16.msra.mxu0 0
    %281 = vmatpush.bf16.msra.mxu0 0
    %282 = vmatpush.bf16.msra.mxu0 %v183
    %283 = vmatpush.bf16.msra.mxu0 %v182
    %284 = vmatpush.bf16.msra.mxu0 %v181
    %285 = vmatpush.bf16.msra.mxu0 %v180
    %286 = vmatpush.bf16.msra.mxu0 %v179
    %287 = vmatmul.bf16.gmra.mxu0 %v277
    %v288 = vpop.f32.mrf.mxu0
    %v289 = vadd.f32 %v84, %v288
    %v290 = vpop.f32.mrf.mxu0
    %291 = vdwg.mxu0
    %292 = vmatpush.bf16.msra.mxu0 0
    %293 = vmatpush.bf16.msra.mxu0 0
    %294 = vmatpush.bf16.msra.mxu0 0
    %295 = vmatpush.bf16.msra.mxu0 %v113
    %296 = vmatpush.bf16.msra.mxu0 %v112
    %297 = vmatpush.bf16.msra.mxu0 %v111
    %298 = vmatpush.bf16.msra.mxu0 %v110
    %299 = vmatpush.bf16.msra.mxu0 %v109
    %300 = vmatmul.bf16.gmra.mxu0 %v277
    %v301 = vpop.f32.mrf.mxu0
    %v302 = vadd.f32 %v85, %v301
    %v303 = vpop.f32.mrf.mxu0
    %304 = vdwg.mxu0
    %v305 = vmul.f32 %v289, 0.5
    %v306 = vtanh.pop %v305
    %v307 = vmul.f32 %v306, 0.5
    %v308 = vadd.f32 %v307, 0.5
    %310 = vrot.lane.b32.xlu0 %v289, 32
    %v311 = vpop.permute.xlu0 %310
    %v313 = vmul.f32 %v308, %v311
    %315 = vrot.lane.b32.xlu0 %v313, 64
    %v316 = vpop.permute.xlu0 %315
    %v318 = vadd.f32 %v289, %v316
    %v319 = vtanh.pop %v318
    %v320 = vsub.f32 1.0, %v308
    %322 = vrot.lane.b32.xlu0 %v319, 96
    %v323 = vpop.permute.xlu0 %322
    %v325 = vmul.f32 %v320, %v323
    %v326 = vmul.f32 %v308, %v238
    %v327 = vadd.f32 %v325, %v326
    %v328 = vmul.f32 %v302, 0.5
    %v329 = vtanh.pop %v328
    %v330 = vmul.f32 %v329, 0.5
    %v331 = vadd.f32 %v330, 0.5
    %333 = vrot.lane.b32.xlu0 %v302, 32
    %v334 = vpop.permute.xlu0 %333
    %v336 = vmul.f32 %v331, %v334
    %338 = vrot.lane.b32.xlu0 %v336, 64
    %v339 = vpop.permute.xlu0 %338
    %v341 = vadd.f32 %v302, %v339
    %v342 = vtanh.pop %v341
    %v343 = vsub.f32 1.0, %v331
    %345 = vrot.lane.b32.xlu0 %v342, 96
    %v346 = vpop.permute.xlu0 %345
    %v348 = vmul.f32 %v343, %v346
    %v349 = vmul.f32 %v331, %v261
    %v350 = vadd.f32 %v348, %v349
    %351 = vrot.lane.b32.xlu0 %v83, 80
    %v352 = vpop.permute.xlu0 %351
    %355 = vrot.lane.b32.xlu0 %v350, 112
    %v356 = vpop.permute.xlu0 %355
    %359 = vrot.lane.b32.xlu0 %v327, 16
    %v360 = vpop.permute.xlu0 %359
    %v362 = vsel %vm86, %v352, %v356
    %v363 = vsel %vm166, %v362, %v360
    %v364 = vpack.c.bf16 %v363, %v363
    %v366 = vsel %vm119, %v364, 0
    %368 = vmatpush.bf16.msra.mxu0 0
    %369 = vmatpush.bf16.msra.mxu0 0
    %370 = vmatpush.bf16.msra.mxu0 0
    %371 = vmatpush.bf16.msra.mxu0 %v183
    %372 = vmatpush.bf16.msra.mxu0 %v182
    %373 = vmatpush.bf16.msra.mxu0 %v181
    %374 = vmatpush.bf16.msra.mxu0 %v180
    %375 = vmatpush.bf16.msra.mxu0 %v179
    %376 = vmatmul.bf16.gmra.mxu0 %v366
    %v377 = vpop.f32.mrf.mxu0
    %v378 = vadd.f32 %v84, %v377
    %v379 = vpop.f32.mrf.mxu0
    %380 = vdwg.mxu0
    %381 = vmatpush.bf16.msra.mxu0 0
    %382 = vmatpush.bf16.msra.mxu0 0
    %383 = vmatpush.bf16.msra.mxu0 0
    %384 = vmatpush.bf16.msra.mxu0 %v113
    %385 = vmatpush.bf16.msra.mxu0 %v112
    %386 = vmatpush.bf16.msra.mxu0 %v111
    %387 = vmatpush.bf16.msra.mxu0 %v110
    %388 = vmatpush.bf16.msra.mxu0 %v109
    %389 = vmatmul.bf16.gmra.mxu0 %v366
    %v390 = vpop.f32.mrf.mxu0
    %v391 = vadd.f32 %v85, %v390
    %v392 = vpop.f32.mrf.mxu0
    %393 = vdwg.mxu0
    %v394 = vmul.f32 %v378, 0.5
    %v395 = vtanh.pop %v394
    %v396 = vmul.f32 %v395, 0.5
    %v397 = vadd.f32 %v396, 0.5
    %399 = vrot.lane.b32.xlu0 %v378, 32
    %v400 = vpop.permute.xlu0 %399
    %v402 = vmul.f32 %v397, %v400
    %404 = vrot.lane.b32.xlu0 %v402, 64
    %v405 = vpop.permute.xlu0 %404
    %v407 = vadd.f32 %v378, %v405
    %v408 = vtanh.pop %v407
    %v409 = vsub.f32 1.0, %v397
    %411 = vrot.lane.b32.xlu0 %v408, 96
    %v412 = vpop.permute.xlu0 %411
    %v414 = vmul.f32 %v409, %v412
    %v415 = vmul.f32 %v397, %v327
    %v416 = vadd.f32 %v414, %v415
    %v417 = vmul.f32 %v391, 0.5
    %v418 = vtanh.pop %v417
    %v419 = vmul.f32 %v418, 0.5
    %v420 = vadd.f32 %v419, 0.5
    %422 = vrot.lane.b32.xlu0 %v391, 32
    %v423 = vpop.permute.xlu0 %422
    %v425 = vmul.f32 %v420, %v423
    %427 = vrot.lane.b32.xlu0 %v425, 64
    %v428 = vpop.permute.xlu0 %427
    %v430 = vadd.f32 %v391, %v428
    %v431 = vtanh.pop %v430
    %v432 = vsub.f32 1.0, %v420
    %434 = vrot.lane.b32.xlu0 %v431, 96
    %v435 = vpop.permute.xlu0 %434
    %v437 = vmul.f32 %v432, %v435
    %v438 = vmul.f32 %v420, %v350
    %v439 = vadd.f32 %v437, %v438
    %440 = vrot.lane.b32.xlu0 %v83, 64
    %v441 = vpop.permute.xlu0 %440
    %444 = vrot.lane.b32.xlu0 %v439, 112
    %v445 = vpop.permute.xlu0 %444
    %448 = vrot.lane.b32.xlu0 %v416, 16
    %v449 = vpop.permute.xlu0 %448
    %v451 = vsel %vm86, %v441, %v445
    %v452 = vsel %vm166, %v451, %v449
    %v453 = vpack.c.bf16 %v452, %v452
    %v455 = vsel %vm119, %v453, 0
    %457 = vmatpush.bf16.msra.mxu0 0
    %458 = vmatpush.bf16.msra.mxu0 0
    %459 = vmatpush.bf16.msra.mxu0 0
    %460 = vmatpush.bf16.msra.mxu0 %v183
    %461 = vmatpush.bf16.msra.mxu0 %v182
    %462 = vmatpush.bf16.msra.mxu0 %v181
    %463 = vmatpush.bf16.msra.mxu0 %v180
    %464 = vmatpush.bf16.msra.mxu0 %v179
    %465 = vmatmul.bf16.gmra.mxu0 %v455
    %v466 = vpop.f32.mrf.mxu0
    %v467 = vadd.f32 %v84, %v466
    %v468 = vpop.f32.mrf.mxu0
    %469 = vdwg.mxu0
    %470 = vmatpush.bf16.msra.mxu0 0
    %471 = vmatpush.bf16.msra.mxu0 0
    %472 = vmatpush.bf16.msra.mxu0 0
    %473 = vmatpush.bf16.msra.mxu0 %v113
    %474 = vmatpush.bf16.msra.mxu0 %v112
    %475 = vmatpush.bf16.msra.mxu0 %v111
    %476 = vmatpush.bf16.msra.mxu0 %v110
    %477 = vmatpush.bf16.msra.mxu0 %v109
    %478 = vmatmul.bf16.gmra.mxu0 %v455
    %v479 = vpop.f32.mrf.mxu0
    %v480 = vadd.f32 %v85, %v479
    %v481 = vpop.f32.mrf.mxu0
    %482 = vdwg.mxu0
    %v483 = vmul.f32 %v467, 0.5
    %v484 = vtanh.pop %v483
    %v485 = vmul.f32 %v484, 0.5
    %v486 = vadd.f32 %v485, 0.5
    %488 = vrot.lane.b32.xlu0 %v467, 32
    %v489 = vpop.permute.xlu0 %488
    %v491 = vmul.f32 %v486, %v489
    %493 = vrot.lane.b32.xlu0 %v491, 64
    %v494 = vpop.permute.xlu0 %493
    %v496 = vadd.f32 %v467, %v494
    %v497 = vtanh.pop %v496
    %v498 = vsub.f32 1.0, %v486
    %500 = vrot.lane.b32.xlu0 %v497, 96
    %v501 = vpop.permute.xlu0 %500
    %v503 = vmul.f32 %v498, %v501
    %v504 = vmul.f32 %v486, %v416
    %v505 = vadd.f32 %v503, %v504
    %v506 = vmul.f32 %v480, 0.5
    %v507 = vtanh.pop %v506
    %v508 = vmul.f32 %v507, 0.5
    %v509 = vadd.f32 %v508, 0.5
    %511 = vrot.lane.b32.xlu0 %v480, 32
    %v512 = vpop.permute.xlu0 %511
    %v514 = vmul.f32 %v509, %v512
    %516 = vrot.lane.b32.xlu0 %v514, 64
    %v517 = vpop.permute.xlu0 %516
    %v519 = vadd.f32 %v480, %v517
    %v520 = vtanh.pop %v519
    %v521 = vsub.f32 1.0, %v509
    %523 = vrot.lane.b32.xlu0 %v520, 96
    %v524 = vpop.permute.xlu0 %523
    %v526 = vmul.f32 %v521, %v524
    %v527 = vmul.f32 %v509, %v439
    %v528 = vadd.f32 %v526, %v527
    %529 = vrot.lane.b32.xlu0 %v83, 48
    %v530 = vpop.permute.xlu0 %529
    %533 = vrot.lane.b32.xlu0 %v528, 112
    %v534 = vpop.permute.xlu0 %533
    %537 = vrot.lane.b32.xlu0 %v505, 16
    %v538 = vpop.permute.xlu0 %537
    %v540 = vsel %vm86, %v530, %v534
    %v541 = vsel %vm166, %v540, %v538
    %v542 = vpack.c.bf16 %v541, %v541
    %v544 = vsel %vm119, %v542, 0
    %546 = vmatpush.bf16.msra.mxu0 0
    %547 = vmatpush.bf16.msra.mxu0 0
    %548 = vmatpush.bf16.msra.mxu0 0
    %549 = vmatpush.bf16.msra.mxu0 %v183
    %550 = vmatpush.bf16.msra.mxu0 %v182
    %551 = vmatpush.bf16.msra.mxu0 %v181
    %552 = vmatpush.bf16.msra.mxu0 %v180
    %553 = vmatpush.bf16.msra.mxu0 %v179
    %554 = vmatmul.bf16.gmra.mxu0 %v544
    %v555 = vpop.f32.mrf.mxu0
    %v556 = vadd.f32 %v84, %v555
    %v557 = vpop.f32.mrf.mxu0
    %558 = vdwg.mxu0
    %559 = vmatpush.bf16.msra.mxu0 0
    %560 = vmatpush.bf16.msra.mxu0 0
    %561 = vmatpush.bf16.msra.mxu0 0
    %562 = vmatpush.bf16.msra.mxu0 %v113
    %563 = vmatpush.bf16.msra.mxu0 %v112
    %564 = vmatpush.bf16.msra.mxu0 %v111
    %565 = vmatpush.bf16.msra.mxu0 %v110
    %566 = vmatpush.bf16.msra.mxu0 %v109
    %567 = vmatmul.bf16.gmra.mxu0 %v544
    %v568 = vpop.f32.mrf.mxu0
    %v569 = vadd.f32 %v85, %v568
    %v570 = vpop.f32.mrf.mxu0
    %571 = vdwg.mxu0
    %v572 = vmul.f32 %v556, 0.5
    %v573 = vtanh.pop %v572
    %v574 = vmul.f32 %v573, 0.5
    %v575 = vadd.f32 %v574, 0.5
    %577 = vrot.lane.b32.xlu0 %v556, 32
    %v578 = vpop.permute.xlu0 %577
    %v580 = vmul.f32 %v575, %v578
    %582 = vrot.lane.b32.xlu0 %v580, 64
    %v583 = vpop.permute.xlu0 %582
    %v585 = vadd.f32 %v556, %v583
    %v586 = vtanh.pop %v585
    %v587 = vsub.f32 1.0, %v575
    %589 = vrot.lane.b32.xlu0 %v586, 96
    %v590 = vpop.permute.xlu0 %589
    %v592 = vmul.f32 %v587, %v590
    %v593 = vmul.f32 %v575, %v505
    %v594 = vadd.f32 %v592, %v593
    %v595 = vmul.f32 %v569, 0.5
    %v596 = vtanh.pop %v595
    %v597 = vmul.f32 %v596, 0.5
    %v598 = vadd.f32 %v597, 0.5
    %600 = vrot.lane.b32.xlu0 %v569, 32
    %v601 = vpop.permute.xlu0 %600
    %v603 = vmul.f32 %v598, %v601
    %605 = vrot.lane.b32.xlu0 %v603, 64
    %v606 = vpop.permute.xlu0 %605
    %v608 = vadd.f32 %v569, %v606
    %v609 = vtanh.pop %v608
    %v610 = vsub.f32 1.0, %v598
    %612 = vrot.lane.b32.xlu0 %v609, 96
    %v613 = vpop.permute.xlu0 %612
    %v615 = vmul.f32 %v610, %v613
    %v616 = vmul.f32 %v598, %v528
    %v617 = vadd.f32 %v615, %v616
    %618 = vrot.lane.b32.xlu0 %v83, 32
    %v619 = vpop.permute.xlu0 %618
    %622 = vrot.lane.b32.xlu0 %v617, 112
    %v623 = vpop.permute.xlu0 %622
    %626 = vrot.lane.b32.xlu0 %v594, 16
    %v627 = vpop.permute.xlu0 %626
    %v629 = vsel %vm86, %v619, %v623
    %v630 = vsel %vm166, %v629, %v627
    %v631 = vpack.c.bf16 %v630, %v630
    %v633 = vsel %vm119, %v631, 0
    %635 = vmatpush.bf16.msra.mxu0 0
    %636 = vmatpush.bf16.msra.mxu0 0
    %637 = vmatpush.bf16.msra.mxu0 0
    %638 = vmatpush.bf16.msra.mxu0 %v183
    %639 = vmatpush.bf16.msra.mxu0 %v182
    %640 = vmatpush.bf16.msra.mxu0 %v181
    %641 = vmatpush.bf16.msra.mxu0 %v180
    %642 = vmatpush.bf16.msra.mxu0 %v179
    %643 = vmatmul.bf16.gmra.mxu0 %v633
    %v644 = vpop.f32.mrf.mxu0
    %v645 = vadd.f32 %v84, %v644
    %v646 = vpop.f32.mrf.mxu0
    %647 = vdwg.mxu0
    %648 = vmatpush.bf16.msra.mxu0 0
    %649 = vmatpush.bf16.msra.mxu0 0
    %650 = vmatpush.bf16.msra.mxu0 0
    %651 = vmatpush.bf16.msra.mxu0 %v113
    %652 = vmatpush.bf16.msra.mxu0 %v112
    %653 = vmatpush.bf16.msra.mxu0 %v111
    %654 = vmatpush.bf16.msra.mxu0 %v110
    %655 = vmatpush.bf16.msra.mxu0 %v109
    %656 = vmatmul.bf16.gmra.mxu0 %v633
    %v657 = vpop.f32.mrf.mxu0
    %v658 = vadd.f32 %v85, %v657
    %v659 = vpop.f32.mrf.mxu0
    %660 = vdwg.mxu0
    %v661 = vmul.f32 %v645, 0.5
    %v662 = vtanh.pop %v661
    %v663 = vmul.f32 %v662, 0.5
    %v664 = vadd.f32 %v663, 0.5
    %666 = vrot.lane.b32.xlu0 %v645, 32
    %v667 = vpop.permute.xlu0 %666
    %v669 = vmul.f32 %v664, %v667
    %671 = vrot.lane.b32.xlu0 %v669, 64
    %v672 = vpop.permute.xlu0 %671
    %v674 = vadd.f32 %v645, %v672
    %v675 = vtanh.pop %v674
    %v676 = vsub.f32 1.0, %v664
    %678 = vrot.lane.b32.xlu0 %v675, 96
    %v679 = vpop.permute.xlu0 %678
    %v681 = vmul.f32 %v676, %v679
    %v682 = vmul.f32 %v664, %v594
    %v683 = vadd.f32 %v681, %v682
    %v684 = vmul.f32 %v658, 0.5
    %v685 = vtanh.pop %v684
    %v686 = vmul.f32 %v685, 0.5
    %v687 = vadd.f32 %v686, 0.5
    %689 = vrot.lane.b32.xlu0 %v658, 32
    %v690 = vpop.permute.xlu0 %689
    %v692 = vmul.f32 %v687, %v690
    %694 = vrot.lane.b32.xlu0 %v692, 64
    %v695 = vpop.permute.xlu0 %694
    %v697 = vadd.f32 %v658, %v695
    %v698 = vtanh.pop %v697
    %v699 = vsub.f32 1.0, %v687
    %701 = vrot.lane.b32.xlu0 %v698, 96
    %v702 = vpop.permute.xlu0 %701
    %v704 = vmul.f32 %v699, %v702
    %v705 = vmul.f32 %v687, %v617
    %v706 = vadd.f32 %v704, %v705
    %707 = vrot.lane.b32.xlu0 %v83, 16
    %v708 = vpop.permute.xlu0 %707
    %711 = vrot.lane.b32.xlu0 %v706, 112
    %v712 = vpop.permute.xlu0 %711
    %715 = vrot.lane.b32.xlu0 %v683, 16
    %v716 = vpop.permute.xlu0 %715
    %v718 = vsel %vm86, %v708, %v712
    %v719 = vsel %vm166, %v718, %v716
    %v720 = vpack.c.bf16 %v719, %v719
    %v722 = vsel %vm119, %v720, 0
    %724 = vmatpush.bf16.msra.mxu0 0
    %725 = vmatpush.bf16.msra.mxu0 0
    %726 = vmatpush.bf16.msra.mxu0 0
    %727 = vmatpush.bf16.msra.mxu0 %v183
    %728 = vmatpush.bf16.msra.mxu0 %v182
    %729 = vmatpush.bf16.msra.mxu0 %v181
    %730 = vmatpush.bf16.msra.mxu0 %v180
    %731 = vmatpush.bf16.msra.mxu0 %v179
    %732 = vmatmul.bf16.gmra.mxu0 %v722
    %v733 = vpop.f32.mrf.mxu0
    %v734 = vadd.f32 %v84, %v733
    %v735 = vpop.f32.mrf.mxu0
    %736 = vdwg.mxu0
    %737 = vmatpush.bf16.msra.mxu0 0
    %738 = vmatpush.bf16.msra.mxu0 0
    %739 = vmatpush.bf16.msra.mxu0 0
    %740 = vmatpush.bf16.msra.mxu0 %v113
    %741 = vmatpush.bf16.msra.mxu0 %v112
    %742 = vmatpush.bf16.msra.mxu0 %v111
    %743 = vmatpush.bf16.msra.mxu0 %v110
    %744 = vmatpush.bf16.msra.mxu0 %v109
    %745 = vmatmul.bf16.gmra.mxu0 %v722
    %v746 = vpop.f32.mrf.mxu0
    %v747 = vadd.f32 %v85, %v746
    %v748 = vpop.f32.mrf.mxu0
    %749 = vdwg.mxu0
    %v750 = vmul.f32 %v734, 0.5
    %v751 = vtanh.pop %v750
    %v752 = vmul.f32 %v751, 0.5
    %v753 = vadd.f32 %v752, 0.5
    %755 = vrot.lane.b32.xlu0 %v734, 32
    %v756 = vpop.permute.xlu0 %755
    %v758 = vmul.f32 %v753, %v756
    %760 = vrot.lane.b32.xlu0 %v758, 64
    %v761 = vpop.permute.xlu0 %760
    %v763 = vadd.f32 %v734, %v761
    %v764 = vtanh.pop %v763
    %v765 = vsub.f32 1.0, %v753
    %767 = vrot.lane.b32.xlu0 %v764, 96
    %v768 = vpop.permute.xlu0 %767
    %v770 = vmul.f32 %v765, %v768
    %v771 = vmul.f32 %v753, %v683
    %v772 = vadd.f32 %v770, %v771
    %v773 = vmul.f32 %v747, 0.5
    %v774 = vtanh.pop %v773
    %v775 = vmul.f32 %v774, 0.5
    %v776 = vadd.f32 %v775, 0.5
    %778 = vrot.lane.b32.xlu0 %v747, 32
    %v779 = vpop.permute.xlu0 %778
    %v781 = vmul.f32 %v776, %v779
    %783 = vrot.lane.b32.xlu0 %v781, 64
    %v784 = vpop.permute.xlu0 %783
    %v786 = vadd.f32 %v747, %v784
    %v787 = vtanh.pop %v786
    %v788 = vsub.f32 1.0, %v776
    %790 = vrot.lane.b32.xlu0 %v787, 96
    %v791 = vpop.permute.xlu0 %790
    %v793 = vmul.f32 %v788, %v791
    %v794 = vmul.f32 %v776, %v706
    %v795 = vadd.f32 %v793, %v794
    %797 = vrot.lane.b32.xlu0 %v795, 112
    %v798 = vpop.permute.xlu0 %797
    %801 = vrot.lane.b32.xlu0 %v772, 16
    %v802 = vpop.permute.xlu0 %801
    %v804 = vsel %vm86, %v708, %v798
    %v805 = vsel %vm166, %v804, %v802
    %v806 = vpack.c.bf16 %v805, %v805
    %v808 = vsel %vm119, %v806, 0
    %810 = vmatpush.bf16.msra.mxu0 0
    %811 = vmatpush.bf16.msra.mxu0 0
    %812 = vmatpush.bf16.msra.mxu0 0
    %813 = vmatpush.bf16.msra.mxu0 %v183
    %814 = vmatpush.bf16.msra.mxu0 %v182
    %815 = vmatpush.bf16.msra.mxu0 %v181
    %816 = vmatpush.bf16.msra.mxu0 %v180
    %817 = vmatpush.bf16.msra.mxu0 %v179
    %818 = vmatmul.bf16.gmra.mxu0 %v808
    %v819 = vpop.f32.mrf.mxu0
    %v820 = vadd.f32 %v84, %v819
    %v821 = vpop.f32.mrf.mxu0
    %822 = vdwg.mxu0
    %v823 = vmul.f32 %v820, 0.5
    %v824 = vtanh.pop %v823
    %v825 = vmul.f32 %v824, 0.5
    %v826 = vadd.f32 %v825, 0.5
    %828 = vrot.lane.b32.xlu0 %v820, 32
    %v829 = vpop.permute.xlu0 %828
    %v831 = vmul.f32 %v826, %v829
    %833 = vrot.lane.b32.xlu0 %v831, 64
    %v834 = vpop.permute.xlu0 %833
    %v836 = vadd.f32 %v820, %v834
    %v837 = vtanh.pop %v836
    %v838 = vsub.f32 1.0, %v826
    %840 = vrot.lane.b32.xlu0 %v837, 96
    %v841 = vpop.permute.xlu0 %840
    %v843 = vmul.f32 %v838, %v841
    %v844 = vmul.f32 %v826, %v772
    %v845 = vadd.f32 %v843, %v844
    %v846 = vperm.slane %v73, 0
    %v847 = vperm.slane %v74, 0
    %849 = vrot.lane.b32.xlu0 %v845, 96
    %v850 = vpop.permute.xlu0 %849
    %vm851 = vcmask 261120
    %v852 = vsel %vm851, %v850, 0
    %854 = vmatpush.msra.mxu0 0.0
    %855 = vmatpush.msra.mxu0 0.0
    %856 = vmatpush.msra.mxu0 0.0
    %857 = vmatpush.msra.mxu0 0.0
    %858 = vmatpush.msra.mxu0 0.0
    %859 = vmatpush.msra.mxu0 0.0
    %860 = vmatpush.msra.mxu0 0.0
    %861 = vmatpush.msra.mxu0 0.0
    %862 = vmatpush.msra.mxu0 0.0
    %863 = vmatpush.msra.mxu0 0.0
    %864 = vmatpush.msra.mxu0 0.0
    %865 = vmatpush.msra.mxu0 0.0
    %866 = vmatpush.msra.mxu0 %v81
    %867 = vmatpush.msra.mxu0 %v79
    %868 = vmatpush.msra.mxu0 %v77
    %869 = vmatpush.msra.mxu0 %v75
    %870 = vmatmul.f32.gmra.mxu0 %v852
    %v871 = vpop.f32.mrf.mxu0
    %v872 = vadd.f32 %v846, %v871
    %873 = vdwg.mxu0
    %874 = vmatpush.msra.mxu0 0.0
    %875 = vmatpush.msra.mxu0 0.0
    %876 = vmatpush.msra.mxu0 0.0
    %877 = vmatpush.msra.mxu0 0.0
    %878 = vmatpush.msra.mxu0 0.0
    %879 = vmatpush.msra.mxu0 0.0
    %880 = vmatpush.msra.mxu0 0.0
    %881 = vmatpush.msra.mxu0 0.0
    %882 = vmatpush.msra.mxu0 0.0
    %883 = vmatpush.msra.mxu0 0.0
    %884 = vmatpush.msra.mxu0 0.0
    %885 = vmatpush.msra.mxu0 0.0
    %886 = vmatpush.msra.mxu0 %v82
    %887 = vmatpush.msra.mxu0 %v80
    %888 = vmatpush.msra.mxu0 %v78
    %889 = vmatpush.msra.mxu0 %v76
    %890 = vmatmul.f32.gmra.mxu0 %v852
    %v891 = vpop.f32.mrf.mxu0
    %v892 = vadd.f32 %v847, %v891
    %893 = vdwg.mxu0
    %v894 = vlaneseq
    %v895 = vand.u32 %v894, 127
    %v896 = vadd.s32 %v895, 128
    %vm897 = vcmp.lt.s32.totalorder %v895, 8
    %vm898 = vcmp.lt.s32.totalorder %v896, 8
    %v899 = vsel %vm897, %v872, -1e+30
    %v900 = vsel %vm898, %v892, -1e+30
    %v901 = vmax.f32 %v899, %v900
    %902 = vmax.xlane.f32.xlu0 %v901
    %v903 = vpop.xlane.xlu0 %902
    %v904 = vsub.f32 %v899, %v903
    %v905 = vsub.f32 %v900, %v903
    %v906 = vmul.f32 %v904, 1.442695
    %v907 = vpow.pop %v906
    %v908 = vmul.f32 %v905, 1.442695
    %v909 = vpow.pop %v908
    %v910 = vadd.f32 %v907, %v909
    %911 = vadd.xlane.f32.xlu0 %v910
    %v912 = vpop.xlane.xlu0 %911
    %v913 = vrcp.pop %v912
    %v914 = vmul.f32 %v907, %v913
    %v915 = vmul.f32 %v909, %v913
    %916 = vst [vmem:[#allocation8] sm:$0xff] %v914
    %917 = vst [vmem:[#allocation8 + $0x8] sm:$0xff] %v915
    // Predicated region
    $region26: #{tpu_custom_call.1} parent=1 // pred_check
      _
    $region27: #{tpu_custom_call.1} parent=1 // pred_check_branch
      %919 = sbr.rel (0) target = $region29
    $region28: #{tpu_custom_call.1} parent=1 // pred_region
      %921 = vsyncadd [#allocation4], 0
      %s923 = sshll.u32 [#allocation8], 4
      %s924 = int_to_ptr.vmem [resolvable:$true] %s923
      %s925 = sshll.u32 %s3, 4
      %s926 = int_to_ptr.hbm [resolvable:$true] %s925
      %928 = dma.vmem_to_hbm [thread:$0]  %s924, 256, %s926, [#allocation4]
    $region29: #{tpu_custom_call.1} parent=1 // pred_fallthru
      _
    // Predicated region
    $region30: #{tpu_custom_call.1} parent=1 // pred_check
      _
    $region31: #{tpu_custom_call.1} parent=1 // pred_check_branch
      %930 = sbr.rel (0) target = $region33
    $region32: #{tpu_custom_call.1} parent=1 // pred_region
      %932 = dma.done [#allocation4], 256
    $region33: #{tpu_custom_call.1} parent=1 // pred_fallthru
      _
    %933 = vsyncpa [#allocation3], 1
    %934 = vsyncpa [#allocation6], 1
    %935 = vsyncpa [#allocation4], 1

</llo_original>
